<compile_context>
chip_gen: v6e
topology: v6e:2x2x1
jax: 0.10.0
libtpu: 0.0.40
codegen_flags: <defaults>
</compile_context>

<pallas_src>
import functools

import numpy as np
import jax
import jax.numpy as jnp
from jax import lax
from jax.experimental import pallas as pl
from jax.experimental.pallas import tpu as pltpu


# ----------------------------- Pallas kernels ------------------------------

def _upsample_fused_kernel(x_ref, ws_ref, bs_ref, wt_ref, bt_ref, res_ref,
                           o_ref, mean_ref, *, temp_scale):
    """Fused Upsampling(interpolate=False) + residual add + spatial mean.

    x_ref:   (1, T, H+1, W+1, Cin)   input level, zero-padded by 1 on hi H/W
    ws_ref:  (3, 3, Cin, Cout)       spatial ConvTranspose taps (BN scale folded)
    bs_ref:  (1, Cout)               spatial folded BN bias (f32)
    wt_ref:  (3, Cout, Cout)         temporal ConvTranspose taps (BN scale folded)
    bt_ref:  (1, Cout)               temporal folded BN bias (f32)
    res_ref: (1, Tf, 2H, 2W, Cout)   residual (the finer pyramid level)
    o_ref:   (1, Tf, 2H, 2W, Cout)   updated finer level
    mean_ref:(1, Tf, Cout)           mean over (2H, 2W) of the updated level (f32)
    """
    _, T, Hp1, Wp1, Cin = x_ref.shape
    H, W = Hp1 - 1, Wp1 - 1
    _, Tf, H2, W2, Cout = o_ref.shape
    M = T * H * W
    cdt = x_ref.dtype

    def tap(dh, dw):
        # batched over all frames: (T*H*W, Cin)
        return x_ref[0, :, dh:dh + H, dw:dw + W, :].reshape(M, Cin)

    def mm(a, w):
        return jnp.dot(a, w, preferred_element_type=jnp.float32)

    x00, x01, x10, x11 = tap(0, 0), tap(0, 1), tap(1, 0), tap(1, 1)
    bs = bs_ref[...]                                       # (1, Cout), f32

    def phase(acc):
        return jnp.maximum(acc + bs, 0.0).reshape(T, H, W, Cout)

    # Output-phase decomposition of ConvTranspose2d(k=3, s=2, p=1, op=1):
    #   out[2h  , 2w  ] = x[h,w]@W[1,1]
    #   out[2h  , 2w+1] = x[h,w]@W[1,2] + x[h,w+1]@W[1,0]
    #   out[2h+1, 2w  ] = x[h,w]@W[2,1] + x[h+1,w]@W[0,1]
    #   out[2h+1, 2w+1] = x[h,w]@W[2,2] + x[h,w+1]@W[2,0]
    #                     + x[h+1,w]@W[0,2] + x[h+1,w+1]@W[0,0]
    ee = phase(mm(x00, ws_ref[1, 1]))
    eo = phase(mm(x00, ws_ref[1, 2]) + mm(x01, ws_ref[1, 0]))
    oe = phase(mm(x00, ws_ref[2, 1]) + mm(x10, ws_ref[0, 1]))
    oo = phase(mm(x00, ws_ref[2, 2]) + mm(x01, ws_ref[2, 0]) +
               mm(x10, ws_ref[0, 2]) + mm(x11, ws_ref[0, 0]))

    # Interleave phases -> y (T, 2H, 2W, Cout); stays in VMEM only.
    row_e = jnp.stack([ee, eo], axis=3).reshape(T, H, W2, Cout)
    row_o = jnp.stack([oe, oo], axis=3).reshape(T, H, W2, Cout)
    y = jnp.stack([row_e, row_o], axis=2).reshape(T, H2, W2, Cout)

    # Temporal transposed conv (k=3): q_j[t] = y[t] @ Wt[j], batched over T*2H*2W rows.
    yf = y.reshape(T * H2 * W2, Cout).astype(cdt)
    q0 = mm(yf, wt_ref[0]).reshape(T, H2, W2, Cout)
    q1 = mm(yf, wt_ref[1]).reshape(T, H2, W2, Cout)
    q2 = mm(yf, wt_ref[2]).reshape(T, H2, W2, Cout)
    bt = bt_ref[...].reshape(1, 1, 1, Cout)
    zf = jnp.zeros((1, H2, W2, Cout), jnp.float32)
    q0_next = jnp.concatenate([q0[1:], zf], axis=0)        # y[t+1] @ Wt[0]

    if temp_scale == 2:
        # s=2, p=1, op=1:  z[2t] = y[t]@Wt[1] ;  z[2t+1] = y[t]@Wt[2] + y[t+1]@Wt[0]
        z_e = jnp.maximum(q1 + bt, 0.0)
        z_o = jnp.maximum(q2 + q0_next + bt, 0.0)
        z = jnp.stack([z_e, z_o], axis=1).reshape(Tf, H2, W2, Cout)
    else:
        # s=1, p=1:  z[t] = y[t-1]@Wt[2] + y[t]@Wt[1] + y[t+1]@Wt[0]
        q2_prev = jnp.concatenate([zf, q2[:-1]], axis=0)
        z = jnp.maximum(q2_prev + q1 + q0_next + bt, 0.0)

    out = res_ref[0].astype(jnp.float32) + z
    o_ref[0] = out.astype(o_ref.dtype)                     # one whole-block store
    mean_ref[0] = (out.reshape(Tf, H2 * W2, Cout).sum(axis=1)
                   * (1.0 / float(H2 * W2)))


def _mean_hw_kernel(x_ref, o_ref):
    """(1,T,H,W,C) -> (1,T,C): mean over H,W, all frames reduced at once."""
    _, T, H, W, C = x_ref.shape
    x = x_ref[0].astype(jnp.float32).reshape(T, H * W, C)
    o_ref[0] = jnp.sum(x, axis=1) * (1.0 / float(H * W))


# ----------------------------- Pallas wrappers ------------------------------

def upsample_add_mean(x, residual, p, temp_scale, compute_dtype=jnp.float32,
                      donate_residual=False):
    """One fused pallas_call per level: upsample(x) + residual, and its HW mean."""
    N, T, H, W, Cin = x.shape
    _, Tf, H2, W2, Cout = residual.shape

    # Fold BN scale into the (un-flipped) transposed-conv taps; bias stays f32.
    ws = (jnp.transpose(p["w_s_pt"][:, :, 0], (2, 3, 0, 1))
          * p["scale_s"].reshape(1, 1, 1, Cout)).astype(compute_dtype)
    wt = (jnp.transpose(p["w_t_pt"][:, :, :, 0, 0], (2, 0, 1))
          * p["scale_t"].reshape(1, 1, Cout)).astype(compute_dtype)
    bs = p["bias_s"].reshape(1, Cout).astype(jnp.float32)
    bt = p["bias_t"].reshape(1, Cout).astype(jnp.float32)

    # 1-element zero pad on the hi side of H/W (boundary taps only); NOT the
    # 4x zero-dilated input of the naive transposed-conv rewrite.
    xpad = jnp.pad(x.astype(compute_dtype),
                   ((0, 0), (0, 0), (0, 1), (0, 1), (0, 0)))
    residual = residual.astype(compute_dtype)

    kernel = functools.partial(_upsample_fused_kernel, temp_scale=temp_scale)
    feat, mean = pl.pallas_call(
        kernel,
        out_shape=(jax.ShapeDtypeStruct((N, Tf, H2, W2, Cout), compute_dtype),
                   jax.ShapeDtypeStruct((N, Tf, Cout), jnp.float32)),
        grid=(N,),
        in_specs=[
            pl.BlockSpec((1, T, H + 1, W + 1, Cin), lambda n: (n, 0, 0, 0, 0)),
            pl.BlockSpec((3, 3, Cin, Cout), lambda n: (0, 0, 0, 0)),
            pl.BlockSpec((1, Cout), lambda n: (0, 0)),
            pl.BlockSpec((3, Cout, Cout), lambda n: (0, 0, 0)),
            pl.BlockSpec((1, Cout), lambda n: (0, 0)),
            pl.BlockSpec((1, Tf, H2, W2, Cout), lambda n: (n, 0, 0, 0, 0)),
        ],
        out_specs=(
            pl.BlockSpec((1, Tf, H2, W2, Cout), lambda n: (n, 0, 0, 0, 0)),
            pl.BlockSpec((1, Tf, Cout), lambda n: (n, 0, 0)),
        ),
        input_output_aliases=({5: 0} if donate_residual else {}),
        compiler_params=pltpu.CompilerParams(
            dimension_semantics=("parallel",)),
    )(xpad, ws, bs, wt, bt, residual)
    return feat, mean


def mean_hw(x):
    """x: (N,T,H,W,C) -> (N,T,C); equals PyTorch .mean(dim=(-2,-1)).permute(0,2,1)."""
    N, T, H, W, C = x.shape
    return pl.pallas_call(
        _mean_hw_kernel,
        out_shape=jax.ShapeDtypeStruct((N, T, C), jnp.float32),
        grid=(N,),
        in_specs=[pl.BlockSpec((1, T, H, W, C), lambda n: (n, 0, 0, 0, 0))],
        out_specs=pl.BlockSpec((1, T, C), lambda n: (n, 0, 0)),
        compiler_params=pltpu.CompilerParams(dimension_semantics=("parallel",)),
    )(x)


# ----------------------------- forward glue ----------------------------------

def pyramid_forward(fea_lst, params, temp_scale, compute_dtype=jnp.float32):
    fea_lst = [f.astype(compute_dtype) for f in fea_lst]
    L = len(fea_lst)
    means = [None] * L
    for i in range(L - 1, 0, -1):
        j = L - 1 - i
        feat, mean = upsample_add_mean(fea_lst[i], fea_lst[i - 1], params[j],
                                       temp_scale[j], compute_dtype=compute_dtype)
        fea_lst[i - 1] = feat           # consumed as input x at the next level
        means[i - 1] = mean             # fea[i-1] is final after this update
    means[L - 1] = mean_hw(fea_lst[L - 1])   # coarsest level is never updated
    # TODO(synk): need_fused=True branch (Temporal_Downsampling + concat) not
    # implemented; module defaults construct and run with need_fused=False.
    return means, []


# ----------------------------- parameters ------------------------------------

def _fold_bn(gamma, beta, mean, var, eps):
    scale = gamma / jnp.sqrt(var + eps)
    bias = beta - mean * scale
    return scale.reshape(1, -1), bias.reshape(1, -1)


def make_upsample_params(key, cin, cout, ksize=3, eps=1e-3):
    ks = jax.random.split(key, 10)
    # PyTorch ConvTranspose3d weight layouts: (Cin, Cout, kT, kH, kW).
    w_s_pt = 0.1 * jax.random.normal(ks[0], (cin, cout, 1, ksize, ksize), jnp.float32)
    w_t_pt = 0.1 * jax.random.normal(ks[1], (cout, cout, ksize, 1, 1), jnp.float32)

    def bn(k0, k1, k2, k3, c):
        gamma = 1.0 + 0.1 * jax.random.normal(k0, (c,), jnp.float32)
        beta = 0.1 * jax.random.normal(k1, (c,), jnp.float32)
        mean = 0.1 * jax.random.normal(k2, (c,), jnp.float32)
        var = 0.5 + jax.random.uniform(k3, (c,), jnp.float32)
        return _fold_bn(gamma, beta, mean, var, eps)

    scale_s, bias_s = bn(ks[2], ks[3], ks[4], ks[5], cout)
    scale_t, bias_t = bn(ks[6], ks[7], ks[8], ks[9], cout)
    return dict(w_s_pt=w_s_pt, w_t_pt=w_t_pt,
                scale_s=scale_s, bias_s=bias_s,
                scale_t=scale_t, bias_t=bias_t)


# ----------------------------- pure-JAX reference -----------------------------

def _zero(x):
    return jnp.asarray(0.0, x.dtype)


def _convtranspose_to_conv_weight(w_pt):
    # Equivalent stride-1 forward-conv weight: flipped taps, layout (kT,kH,kW,Cin,Cout).
    return jnp.transpose(jnp.flip(w_pt, axis=(2, 3, 4)), (2, 3, 4, 0, 1))


def _ref_conv_bn_relu(xp, w, scale, bias, residual=None):
    KT, KH, KW, Cin, Cout = w.shape
    N, Tp, Hp, Wp, _ = xp.shape
    To, Ho, Wo = Tp - KT + 1, Hp - KH + 1, Wp - KW + 1
    acc = jnp.zeros((N, To, Ho, Wo, Cout), jnp.float32)
    for kt in range(KT):
        for kh in range(KH):
            for kw in range(KW):
                patch = xp[:, kt:kt + To, kh:kh + Ho, kw:kw + Wo, :]
                acc = acc + jnp.einsum("nthwc,cd->nthwd", patch, w[kt, kh, kw])
    y = jnp.maximum(acc * scale.reshape(1, 1, 1, 1, Cout)
                    + bias.reshape(1, 1, 1, 1, Cout), 0.0)
    return y if residual is None else residual + y


def _ref_forward(fea_lst, params, temp_scale):
    fea_lst = list(fea_lst)
    L = len(fea_lst)
    for i in range(L - 1, 0, -1):
        j = L - i - 1
        p = params[j]
        w_s = _convtranspose_to_conv_weight(p["w_s_pt"])
        w_t = _convtranspose_to_conv_weight(p["w_t_pt"])
        x = fea_lst[i]
        # spatial ConvTranspose == stride-1 conv over zero-dilated + edge-padded input
        xp = lax.pad(x, _zero(x),
                     [(0, 0, 0), (0, 0, 0), (1, 2, 1), (1, 2, 1), (0, 0, 0)])
        y = _ref_conv_bn_relu(xp, w_s, p["scale_s"], p["bias_s"])
        if temp_scale[j] == 2:
            yp = lax.pad(y, _zero(y),
                         [(0, 0, 0), (1, 2, 1), (0, 0, 0), (0, 0, 0), (0, 0, 0)])
        else:
            yp = lax.pad(y, _zero(y),
                         [(0, 0, 0), (1, 1, 0), (0, 0, 0), (0, 0, 0), (0, 0, 0)])
        fea_lst[i - 1] = _ref_conv_bn_relu(yp, w_t, p["scale_t"], p["bias_t"],
                                           residual=fea_lst[i - 1])
    return [jnp.mean(f, axis=(2, 3)) for f in fea_lst]


# ----------------------------- main -------------------------------------------

if __name__ == "__main__":
    key = jax.random.PRNGKey(0)
    channels = [64, 32, 16, 8]          # scaled-down stand-in for [832, 480, 192, 64]
    temp_scale = [2, 1, 1]
    num_levels = 4
    N = 2
    # (T, H, W) per level; level 3 is coarsest (channels[0]); NTHWC layout.
    thw = {3: (2, 2, 2), 2: (4, 4, 4), 1: (4, 8, 8), 0: (4, 16, 16)}

    keys = jax.random.split(key, 2 * num_levels)
    fea = []
    for lvl in range(num_levels):
        T, H, W = thw[lvl]
        C = channels[num_levels - 1 - lvl]
        fea.append(jax.random.normal(keys[lvl], (N, T, H, W, C), jnp.float32))
    params = [make_upsample_params(keys[num_levels + j], channels[j], channels[j + 1])
              for j in range(num_levels - 1)]

    # reference computed first (pure JAX)
    ref_means = _ref_forward(fea, params, temp_scale)

    # f32 path: matches the reference up to normal f32 rounding
    out_means, fused = pyramid_forward(fea, params, temp_scale,
                                       compute_dtype=jnp.float32)
    out_means = jax.block_until_ready(out_means)
    for got, want in zip(out_means, ref_means):
        np.testing.assert_allclose(np.asarray(got), np.asarray(want),
                                   rtol=1e-4, atol=1e-4)

    # bf16 activation/weight path (f32 MXU accumulation + f32 epilogue),
    # recommended on v6e/v7x; checked with a loose tolerance.
    out_means_bf16, _ = pyramid_forward(fea, params, temp_scale,
                                        compute_dtype=jnp.bfloat16)
    out_means_bf16 = jax.block_until_ready(out_means_bf16)
    for got, want in zip(out_means_bf16, ref_means):
        np.testing.assert_allclose(np.asarray(got, np.float32), np.asarray(want),
                                   rtol=5e-2, atol=5e-2)

    print("KERNEL_OK")
</pallas_src>

<mosaic_0001>
module attributes {stable_mosaic.version = 11 : i64} {
  func.func @_upsample_fused_kernel(%arg0: i32, %arg1: memref<1x2x3x3x64xf32, #tpu.memory_space<vmem>>, %arg2: memref<3x3x64x32xf32, #tpu.memory_space<vmem>>, %arg3: memref<1x32xf32, #tpu.memory_space<vmem>>, %arg4: memref<3x32x32xf32, #tpu.memory_space<vmem>>, %arg5: memref<1x32xf32, #tpu.memory_space<vmem>>, %arg6: memref<1x4x4x4x32xf32, #tpu.memory_space<vmem>>, %arg7: memref<1x4x4x4x32xf32, #tpu.memory_space<vmem>>, %arg8: memref<1x4x32xf32, #tpu.memory_space<vmem>>) attributes {dimension_semantics = [#tpu.dimension_semantics<parallel>], iteration_bounds = array<i64: 2>, scalar_prefetch = 0 : i64, scratch_operands = 0 : i64, tpu.core_type = #tpu.core_type<tc>, window_params = [{transform_indices = @transform_0, window_bounds = array<i64: 1, 2, 3, 3, 64>}, {pipeline_mode = #tpu.pipeline_mode<synchronous>, transform_indices = @transform_1, window_bounds = array<i64: 3, 3, 64, 32>}, {pipeline_mode = #tpu.pipeline_mode<synchronous>, transform_indices = @transform_2, window_bounds = array<i64: 1, 32>}, {pipeline_mode = #tpu.pipeline_mode<synchronous>, transform_indices = @transform_3, window_bounds = array<i64: 3, 32, 32>}, {pipeline_mode = #tpu.pipeline_mode<synchronous>, transform_indices = @transform_4, window_bounds = array<i64: 1, 32>}, {transform_indices = @transform_5, window_bounds = array<i64: 1, 4, 4, 4, 32>}, {transform_indices = @transform_6, window_bounds = array<i64: 1, 4, 4, 4, 32>}, {transform_indices = @transform_7, window_bounds = array<i64: 1, 4, 32>}]} {
    %c0 = arith.constant 0 : index
    %c0_0 = arith.constant 0 : index
    %c0_1 = arith.constant 0 : index
    %c0_2 = arith.constant 0 : index
    %c0_3 = arith.constant 0 : index
    %0 = vector.load %arg1[%c0, %c0_0, %c0_1, %c0_2, %c0_3] : memref<1x2x3x3x64xf32, #tpu.memory_space<vmem>>, vector<1x2x2x2x64xf32>
    %1 = vector.shape_cast %0 : vector<1x2x2x2x64xf32> to vector<2x2x2x64xf32>
    %2 = vector.shape_cast %1 : vector<2x2x2x64xf32> to vector<8x64xf32>
    %c0_4 = arith.constant 0 : index
    %c0_5 = arith.constant 0 : index
    %c0_6 = arith.constant 0 : index
    %c1 = arith.constant 1 : index
    %c0_7 = arith.constant 0 : index
    %3 = vector.load %arg1[%c0_4, %c0_5, %c0_6, %c1, %c0_7] : memref<1x2x3x3x64xf32, #tpu.memory_space<vmem>>, vector<1x2x2x2x64xf32>
    %4 = vector.shape_cast %3 : vector<1x2x2x2x64xf32> to vector<2x2x2x64xf32>
    %5 = vector.shape_cast %4 : vector<2x2x2x64xf32> to vector<8x64xf32>
    %c0_8 = arith.constant 0 : index
    %c0_9 = arith.constant 0 : index
    %c1_10 = arith.constant 1 : index
    %c0_11 = arith.constant 0 : index
    %c0_12 = arith.constant 0 : index
    %6 = vector.load %arg1[%c0_8, %c0_9, %c1_10, %c0_11, %c0_12] : memref<1x2x3x3x64xf32, #tpu.memory_space<vmem>>, vector<1x2x2x2x64xf32>
    %7 = vector.shape_cast %6 : vector<1x2x2x2x64xf32> to vector<2x2x2x64xf32>
    %8 = vector.shape_cast %7 : vector<2x2x2x64xf32> to vector<8x64xf32>
    %c0_13 = arith.constant 0 : index
    %c0_14 = arith.constant 0 : index
    %c1_15 = arith.constant 1 : index
    %c1_16 = arith.constant 1 : index
    %c0_17 = arith.constant 0 : index
    %9 = vector.load %arg1[%c0_13, %c0_14, %c1_15, %c1_16, %c0_17] : memref<1x2x3x3x64xf32, #tpu.memory_space<vmem>>, vector<1x2x2x2x64xf32>
    %10 = vector.shape_cast %9 : vector<1x2x2x2x64xf32> to vector<2x2x2x64xf32>
    %11 = vector.shape_cast %10 : vector<2x2x2x64xf32> to vector<8x64xf32>
    %c0_18 = arith.constant 0 : index
    %c0_19 = arith.constant 0 : index
    %12 = vector.load %arg3[%c0_18, %c0_19] : memref<1x32xf32, #tpu.memory_space<vmem>>, vector<1x32xf32>
    %c1_20 = arith.constant 1 : index
    %c1_21 = arith.constant 1 : index
    %c0_22 = arith.constant 0 : index
    %c0_23 = arith.constant 0 : index
    %13 = vector.load %arg2[%c1_20, %c1_21, %c0_22, %c0_23] : memref<3x3x64x32xf32, #tpu.memory_space<vmem>>, vector<1x1x64x32xf32>
    %14 = vector.shape_cast %13 : vector<1x1x64x32xf32> to vector<64x32xf32>
    %cst = arith.constant dense<0.000000e+00> : vector<8x32xf32>
    %15 = tpu.matmul %2, %14, %cst {dimension_numbers = #tpu.dot_dimension_numbers<[1], [0], [0], [1], [0, 0, 1, 1], [], []>} : vector<8x64xf32>, vector<64x32xf32>, vector<8x32xf32> -> vector<8x32xf32>
    %16 = vector.broadcast %12 : vector<1x32xf32> to vector<8x32xf32>
    %17 = arith.addf %15, %16 : vector<8x32xf32>
    %cst_24 = arith.constant 0.000000e+00 : f32
    %18 = vector.broadcast %cst_24 : f32 to vector<8x32xf32>
    %19 = arith.maximumf %17, %18 : vector<8x32xf32>
    %20 = vector.shape_cast %19 : vector<8x32xf32> to vector<2x2x2x32xf32>
    %c1_25 = arith.constant 1 : index
    %c2 = arith.constant 2 : index
    %c0_26 = arith.constant 0 : index
    %c0_27 = arith.constant 0 : index
    %21 = vector.load %arg2[%c1_25, %c2, %c0_26, %c0_27] : memref<3x3x64x32xf32, #tpu.memory_space<vmem>>, vector<1x1x64x32xf32>
    %22 = vector.shape_cast %21 : vector<1x1x64x32xf32> to vector<64x32xf32>
    %cst_28 = arith.constant dense<0.000000e+00> : vector<8x32xf32>
    %23 = tpu.matmul %2, %22, %cst_28 {dimension_numbers = #tpu.dot_dimension_numbers<[1], [0], [0], [1], [0, 0, 1, 1], [], []>} : vector<8x64xf32>, vector<64x32xf32>, vector<8x32xf32> -> vector<8x32xf32>
    %c1_29 = arith.constant 1 : index
    %c0_30 = arith.constant 0 : index
    %c0_31 = arith.constant 0 : index
    %c0_32 = arith.constant 0 : index
    %24 = vector.load %arg2[%c1_29, %c0_30, %c0_31, %c0_32] : memref<3x3x64x32xf32, #tpu.memory_space<vmem>>, vector<1x1x64x32xf32>
    %25 = vector.shape_cast %24 : vector<1x1x64x32xf32> to vector<64x32xf32>
    %cst_33 = arith.constant dense<0.000000e+00> : vector<8x32xf32>
    %26 = tpu.matmul %5, %25, %cst_33 {dimension_numbers = #tpu.dot_dimension_numbers<[1], [0], [0], [1], [0, 0, 1, 1], [], []>} : vector<8x64xf32>, vector<64x32xf32>, vector<8x32xf32> -> vector<8x32xf32>
    %27 = arith.addf %23, %26 : vector<8x32xf32>
    %28 = vector.broadcast %12 : vector<1x32xf32> to vector<8x32xf32>
    %29 = arith.addf %27, %28 : vector<8x32xf32>
    %cst_34 = arith.constant 0.000000e+00 : f32
    %30 = vector.broadcast %cst_34 : f32 to vector<8x32xf32>
    %31 = arith.maximumf %29, %30 : vector<8x32xf32>
    %32 = vector.shape_cast %31 : vector<8x32xf32> to vector<2x2x2x32xf32>
    %c2_35 = arith.constant 2 : index
    %c1_36 = arith.constant 1 : index
    %c0_37 = arith.constant 0 : index
    %c0_38 = arith.constant 0 : index
    %33 = vector.load %arg2[%c2_35, %c1_36, %c0_37, %c0_38] : memref<3x3x64x32xf32, #tpu.memory_space<vmem>>, vector<1x1x64x32xf32>
    %34 = vector.shape_cast %33 : vector<1x1x64x32xf32> to vector<64x32xf32>
    %cst_39 = arith.constant dense<0.000000e+00> : vector<8x32xf32>
    %35 = tpu.matmul %2, %34, %cst_39 {dimension_numbers = #tpu.dot_dimension_numbers<[1], [0], [0], [1], [0, 0, 1, 1], [], []>} : vector<8x64xf32>, vector<64x32xf32>, vector<8x32xf32> -> vector<8x32xf32>
    %c0_40 = arith.constant 0 : index
    %c1_41 = arith.constant 1 : index
    %c0_42 = arith.constant 0 : index
    %c0_43 = arith.constant 0 : index
    %36 = vector.load %arg2[%c0_40, %c1_41, %c0_42, %c0_43] : memref<3x3x64x32xf32, #tpu.memory_space<vmem>>, vector<1x1x64x32xf32>
    %37 = vector.shape_cast %36 : vector<1x1x64x32xf32> to vector<64x32xf32>
    %cst_44 = arith.constant dense<0.000000e+00> : vector<8x32xf32>
    %38 = tpu.matmul %8, %37, %cst_44 {dimension_numbers = #tpu.dot_dimension_numbers<[1], [0], [0], [1], [0, 0, 1, 1], [], []>} : vector<8x64xf32>, vector<64x32xf32>, vector<8x32xf32> -> vector<8x32xf32>
    %39 = arith.addf %35, %38 : vector<8x32xf32>
    %40 = vector.broadcast %12 : vector<1x32xf32> to vector<8x32xf32>
    %41 = arith.addf %39, %40 : vector<8x32xf32>
    %cst_45 = arith.constant 0.000000e+00 : f32
    %42 = vector.broadcast %cst_45 : f32 to vector<8x32xf32>
    %43 = arith.maximumf %41, %42 : vector<8x32xf32>
    %44 = vector.shape_cast %43 : vector<8x32xf32> to vector<2x2x2x32xf32>
    %c2_46 = arith.constant 2 : index
    %c2_47 = arith.constant 2 : index
    %c0_48 = arith.constant 0 : index
    %c0_49 = arith.constant 0 : index
    %45 = vector.load %arg2[%c2_46, %c2_47, %c0_48, %c0_49] : memref<3x3x64x32xf32, #tpu.memory_space<vmem>>, vector<1x1x64x32xf32>
    %46 = vector.shape_cast %45 : vector<1x1x64x32xf32> to vector<64x32xf32>
    %cst_50 = arith.constant dense<0.000000e+00> : vector<8x32xf32>
    %47 = tpu.matmul %2, %46, %cst_50 {dimension_numbers = #tpu.dot_dimension_numbers<[1], [0], [0], [1], [0, 0, 1, 1], [], []>} : vector<8x64xf32>, vector<64x32xf32>, vector<8x32xf32> -> vector<8x32xf32>
    %c2_51 = arith.constant 2 : index
    %c0_52 = arith.constant 0 : index
    %c0_53 = arith.constant 0 : index
    %c0_54 = arith.constant 0 : index
    %48 = vector.load %arg2[%c2_51, %c0_52, %c0_53, %c0_54] : memref<3x3x64x32xf32, #tpu.memory_space<vmem>>, vector<1x1x64x32xf32>
    %49 = vector.shape_cast %48 : vector<1x1x64x32xf32> to vector<64x32xf32>
    %cst_55 = arith.constant dense<0.000000e+00> : vector<8x32xf32>
    %50 = tpu.matmul %5, %49, %cst_55 {dimension_numbers = #tpu.dot_dimension_numbers<[1], [0], [0], [1], [0, 0, 1, 1], [], []>} : vector<8x64xf32>, vector<64x32xf32>, vector<8x32xf32> -> vector<8x32xf32>
    %51 = arith.addf %47, %50 : vector<8x32xf32>
    %c0_56 = arith.constant 0 : index
    %c2_57 = arith.constant 2 : index
    %c0_58 = arith.constant 0 : index
    %c0_59 = arith.constant 0 : index
    %52 = vector.load %arg2[%c0_56, %c2_57, %c0_58, %c0_59] : memref<3x3x64x32xf32, #tpu.memory_space<vmem>>, vector<1x1x64x32xf32>
    %53 = vector.shape_cast %52 : vector<1x1x64x32xf32> to vector<64x32xf32>
    %cst_60 = arith.constant dense<0.000000e+00> : vector<8x32xf32>
    %54 = tpu.matmul %8, %53, %cst_60 {dimension_numbers = #tpu.dot_dimension_numbers<[1], [0], [0], [1], [0, 0, 1, 1], [], []>} : vector<8x64xf32>, vector<64x32xf32>, vector<8x32xf32> -> vector<8x32xf32>
    %55 = arith.addf %51, %54 : vector<8x32xf32>
    %c0_61 = arith.constant 0 : index
    %c0_62 = arith.constant 0 : index
    %c0_63 = arith.constant 0 : index
    %c0_64 = arith.constant 0 : index
    %56 = vector.load %arg2[%c0_61, %c0_62, %c0_63, %c0_64] : memref<3x3x64x32xf32, #tpu.memory_space<vmem>>, vector<1x1x64x32xf32>
    %57 = vector.shape_cast %56 : vector<1x1x64x32xf32> to vector<64x32xf32>
    %cst_65 = arith.constant dense<0.000000e+00> : vector<8x32xf32>
    %58 = tpu.matmul %11, %57, %cst_65 {dimension_numbers = #tpu.dot_dimension_numbers<[1], [0], [0], [1], [0, 0, 1, 1], [], []>} : vector<8x64xf32>, vector<64x32xf32>, vector<8x32xf32> -> vector<8x32xf32>
    %59 = arith.addf %55, %58 : vector<8x32xf32>
    %60 = vector.broadcast %12 : vector<1x32xf32> to vector<8x32xf32>
    %61 = arith.addf %59, %60 : vector<8x32xf32>
    %cst_66 = arith.constant 0.000000e+00 : f32
    %62 = vector.broadcast %cst_66 : f32 to vector<8x32xf32>
    %63 = arith.maximumf %61, %62 : vector<8x32xf32>
    %64 = vector.shape_cast %63 : vector<8x32xf32> to vector<2x2x2x32xf32>
    %65 = vector.shape_cast %20 : vector<2x2x2x32xf32> to vector<2x2x2x1x32xf32>
    %66 = vector.shape_cast %32 : vector<2x2x2x32xf32> to vector<2x2x2x1x32xf32>
    %67 = tpu.concatenate %65, %66 in 3 : vector<2x2x2x1x32xf32>, vector<2x2x2x1x32xf32> -> vector<2x2x2x2x32xf32>
    %68 = vector.shape_cast %67 : vector<2x2x2x2x32xf32> to vector<2x2x4x32xf32>
    %69 = vector.shape_cast %44 : vector<2x2x2x32xf32> to vector<2x2x2x1x32xf32>
    %70 = vector.shape_cast %64 : vector<2x2x2x32xf32> to vector<2x2x2x1x32xf32>
    %71 = tpu.concatenate %69, %70 in 3 : vector<2x2x2x1x32xf32>, vector<2x2x2x1x32xf32> -> vector<2x2x2x2x32xf32>
    %72 = vector.shape_cast %71 : vector<2x2x2x2x32xf32> to vector<2x2x4x32xf32>
    %73 = vector.shape_cast %68 : vector<2x2x4x32xf32> to vector<2x2x1x4x32xf32>
    %74 = vector.shape_cast %72 : vector<2x2x4x32xf32> to vector<2x2x1x4x32xf32>
    %75 = tpu.concatenate %73, %74 in 2 : vector<2x2x1x4x32xf32>, vector<2x2x1x4x32xf32> -> vector<2x2x2x4x32xf32>
    %76 = vector.shape_cast %75 : vector<2x2x2x4x32xf32> to vector<2x4x4x32xf32>
    %77 = vector.shape_cast %76 : vector<2x4x4x32xf32> to vector<32x32xf32>
    %c0_67 = arith.constant 0 : index
    %c0_68 = arith.constant 0 : index
    %c0_69 = arith.constant 0 : index
    %78 = vector.load %arg4[%c0_67, %c0_68, %c0_69] : memref<3x32x32xf32, #tpu.memory_space<vmem>>, vector<1x32x32xf32>
    %79 = vector.shape_cast %78 : vector<1x32x32xf32> to vector<32x32xf32>
    %cst_70 = arith.constant dense<0.000000e+00> : vector<32x32xf32>
    %80 = tpu.matmul %77, %79, %cst_70 {dimension_numbers = #tpu.dot_dimension_numbers<[1], [0], [0], [1], [0, 0, 1, 1], [], []>} : vector<32x32xf32>, vector<32x32xf32>, vector<32x32xf32> -> vector<32x32xf32>
    %81 = vector.shape_cast %80 : vector<32x32xf32> to vector<2x4x4x32xf32>
    %c1_71 = arith.constant 1 : index
    %c0_72 = arith.constant 0 : index
    %c0_73 = arith.constant 0 : index
    %82 = vector.load %arg4[%c1_71, %c0_72, %c0_73] : memref<3x32x32xf32, #tpu.memory_space<vmem>>, vector<1x32x32xf32>
    %83 = vector.shape_cast %82 : vector<1x32x32xf32> to vector<32x32xf32>
    %cst_74 = arith.constant dense<0.000000e+00> : vector<32x32xf32>
    %84 = tpu.matmul %77, %83, %cst_74 {dimension_numbers = #tpu.dot_dimension_numbers<[1], [0], [0], [1], [0, 0, 1, 1], [], []>} : vector<32x32xf32>, vector<32x32xf32>, vector<32x32xf32> -> vector<32x32xf32>
    %85 = vector.shape_cast %84 : vector<32x32xf32> to vector<2x4x4x32xf32>
    %c2_75 = arith.constant 2 : index
    %c0_76 = arith.constant 0 : index
    %c0_77 = arith.constant 0 : index
    %86 = vector.load %arg4[%c2_75, %c0_76, %c0_77] : memref<3x32x32xf32, #tpu.memory_space<vmem>>, vector<1x32x32xf32>
    %87 = vector.shape_cast %86 : vector<1x32x32xf32> to vector<32x32xf32>
    %cst_78 = arith.constant dense<0.000000e+00> : vector<32x32xf32>
    %88 = tpu.matmul %77, %87, %cst_78 {dimension_numbers = #tpu.dot_dimension_numbers<[1], [0], [0], [1], [0, 0, 1, 1], [], []>} : vector<32x32xf32>, vector<32x32xf32>, vector<32x32xf32> -> vector<32x32xf32>
    %89 = vector.shape_cast %88 : vector<32x32xf32> to vector<2x4x4x32xf32>
    %c0_79 = arith.constant 0 : index
    %c0_80 = arith.constant 0 : index
    %90 = vector.load %arg5[%c0_79, %c0_80] : memref<1x32xf32, #tpu.memory_space<vmem>>, vector<1x32xf32>
    %91 = vector.shape_cast %90 : vector<1x32xf32> to vector<1x1x1x32xf32>
    %cst_81 = arith.constant 0.000000e+00 : f32
    %92 = vector.broadcast %cst_81 : f32 to vector<1x4x4x32xf32>
    %93 = vector.extract_strided_slice %81 {offsets = [1, 0, 0, 0], sizes = [1, 4, 4, 32], strides = [1, 1, 1, 1]} : vector<2x4x4x32xf32> to vector<1x4x4x32xf32>
    %94 = tpu.concatenate %93, %92 in 0 : vector<1x4x4x32xf32>, vector<1x4x4x32xf32> -> vector<2x4x4x32xf32>
    %95 = vector.broadcast %91 : vector<1x1x1x32xf32> to vector<2x4x4x32xf32>
    %96 = arith.addf %85, %95 : vector<2x4x4x32xf32>
    %cst_82 = arith.constant 0.000000e+00 : f32
    %97 = vector.broadcast %cst_82 : f32 to vector<2x4x4x32xf32>
    %98 = arith.maximumf %96, %97 : vector<2x4x4x32xf32>
    %99 = arith.addf %89, %94 : vector<2x4x4x32xf32>
    %100 = vector.broadcast %91 : vector<1x1x1x32xf32> to vector<2x4x4x32xf32>
    %101 = arith.addf %99, %100 : vector<2x4x4x32xf32>
    %cst_83 = arith.constant 0.000000e+00 : f32
    %102 = vector.broadcast %cst_83 : f32 to vector<2x4x4x32xf32>
    %103 = arith.maximumf %101, %102 : vector<2x4x4x32xf32>
    %104 = vector.shape_cast %98 : vector<2x4x4x32xf32> to vector<2x1x4x4x32xf32>
    %105 = vector.shape_cast %103 : vector<2x4x4x32xf32> to vector<2x1x4x4x32xf32>
    %106 = tpu.concatenate %104, %105 in 1 : vector<2x1x4x4x32xf32>, vector<2x1x4x4x32xf32> -> vector<2x2x4x4x32xf32>
    %107 = vector.shape_cast %106 : vector<2x2x4x4x32xf32> to vector<4x4x4x32xf32>
    %c0_84 = arith.constant 0 : index
    %c0_85 = arith.constant 0 : index
    %c0_86 = arith.constant 0 : index
    %c0_87 = arith.constant 0 : index
    %c0_88 = arith.constant 0 : index
    %108 = vector.load %arg6[%c0_84, %c0_85, %c0_86, %c0_87, %c0_88] : memref<1x4x4x4x32xf32, #tpu.memory_space<vmem>>, vector<1x4x4x4x32xf32>
    %109 = vector.shape_cast %108 : vector<1x4x4x4x32xf32> to vector<4x4x4x32xf32>
    %110 = arith.addf %109, %107 : vector<4x4x4x32xf32>
    %c0_89 = arith.constant 0 : index
    %c0_90 = arith.constant 0 : index
    %c0_91 = arith.constant 0 : index
    %c0_92 = arith.constant 0 : index
    %c0_93 = arith.constant 0 : index
    %111 = vector.load %arg7[%c0_89, %c0_90, %c0_91, %c0_92, %c0_93] : memref<1x4x4x4x32xf32, #tpu.memory_space<vmem>>, vector<1x4x4x4x32xf32>
    %112 = vector.shape_cast %111 : vector<1x4x4x4x32xf32> to vector<4x4x4x32xf32>
    %113 = vector.shape_cast %110 : vector<4x4x4x32xf32> to vector<1x4x4x4x32xf32>
    tpu.vector_store %arg7[%c0_89, %c0_90, %c0_91, %c0_92, %c0_93], %113 {strides = array<i32>} : memref<1x4x4x4x32xf32, #tpu.memory_space<vmem>>, vector<1x4x4x4x32xf32>,
    %114 = vector.shape_cast %110 : vector<4x4x4x32xf32> to vector<4x16x32xf32>
    %cst_94 = arith.constant dense<0.000000e+00> : vector<4x32xf32>
    %115 = vector.multi_reduction <add>, %114, %cst_94 [1] : vector<4x16x32xf32> to vector<4x32xf32>
    %cst_95 = arith.constant 6.250000e-02 : f32
    %116 = vector.broadcast %cst_95 : f32 to vector<4x32xf32>
    %117 = arith.mulf %115, %116 : vector<4x32xf32>
    %c0_96 = arith.constant 0 : index
    %c0_97 = arith.constant 0 : index
    %c0_98 = arith.constant 0 : index
    %118 = vector.load %arg8[%c0_96, %c0_97, %c0_98] : memref<1x4x32xf32, #tpu.memory_space<vmem>>, vector<1x4x32xf32>
    %119 = vector.shape_cast %118 : vector<1x4x32xf32> to vector<4x32xf32>
    %120 = vector.shape_cast %117 : vector<4x32xf32> to vector<1x4x32xf32>
    tpu.vector_store %arg8[%c0_96, %c0_97, %c0_98], %120 {strides = array<i32>} : memref<1x4x32xf32, #tpu.memory_space<vmem>>, vector<1x4x32xf32>,
    return
  }
  func.func @transform_0(%arg0: i32) -> (i32, i32, i32, i32, i32) {
    %c0_i32 = arith.constant 0 : i32
    %c0_i32_0 = arith.constant 0 : i32
    %c0_i32_1 = arith.constant 0 : i32
    %c0_i32_2 = arith.constant 0 : i32
    %c0_i32_3 = arith.constant 0 : i32
    return %arg0, %c0_i32, %c0_i32_0, %c0_i32_1, %c0_i32_2 : i32, i32, i32, i32, i32
  }
  func.func @transform_1(%arg0: i32) -> (i32, i32, i32, i32) {
    %c0_i32 = arith.constant 0 : i32
    %c0_i32_0 = arith.constant 0 : i32
    %c0_i32_1 = arith.constant 0 : i32
    %c0_i32_2 = arith.constant 0 : i32
    %c0_i32_3 = arith.constant 0 : i32
    return %c0_i32, %c0_i32_0, %c0_i32_1, %c0_i32_2 : i32, i32, i32, i32
  }
  func.func @transform_2(%arg0: i32) -> (i32, i32) {
    %c0_i32 = arith.constant 0 : i32
    %c0_i32_0 = arith.constant 0 : i32
    %c0_i32_1 = arith.constant 0 : i32
    return %c0_i32, %c0_i32_0 : i32, i32
  }
  func.func @transform_3(%arg0: i32) -> (i32, i32, i32) {
    %c0_i32 = arith.constant 0 : i32
    %c0_i32_0 = arith.constant 0 : i32
    %c0_i32_1 = arith.constant 0 : i32
    %c0_i32_2 = arith.constant 0 : i32
    return %c0_i32, %c0_i32_0, %c0_i32_1 : i32, i32, i32
  }
  func.func @transform_4(%arg0: i32) -> (i32, i32) {
    %c0_i32 = arith.constant 0 : i32
    %c0_i32_0 = arith.constant 0 : i32
    %c0_i32_1 = arith.constant 0 : i32
    return %c0_i32, %c0_i32_0 : i32, i32
  }
  func.func @transform_5(%arg0: i32) -> (i32, i32, i32, i32, i32) {
    %c0_i32 = arith.constant 0 : i32
    %c0_i32_0 = arith.constant 0 : i32
    %c0_i32_1 = arith.constant 0 : i32
    %c0_i32_2 = arith.constant 0 : i32
    %c0_i32_3 = arith.constant 0 : i32
    return %arg0, %c0_i32, %c0_i32_0, %c0_i32_1, %c0_i32_2 : i32, i32, i32, i32, i32
  }
  func.func @transform_6(%arg0: i32) -> (i32, i32, i32, i32, i32) {
    %c0_i32 = arith.constant 0 : i32
    %c0_i32_0 = arith.constant 0 : i32
    %c0_i32_1 = arith.constant 0 : i32
    %c0_i32_2 = arith.constant 0 : i32
    %c0_i32_3 = arith.constant 0 : i32
    return %arg0, %c0_i32, %c0_i32_0, %c0_i32_1, %c0_i32_2 : i32, i32, i32, i32, i32
  }
  func.func @transform_7(%arg0: i32) -> (i32, i32, i32) {
    %c0_i32 = arith.constant 0 : i32
    %c0_i32_0 = arith.constant 0 : i32
    %c0_i32_1 = arith.constant 0 : i32
    return %arg0, %c0_i32, %c0_i32_0 : i32, i32, i32
  }
}

</mosaic_0001>

<llo_original>
// kernel: tpu_custom_call.1
$region0: #{tpu_custom_call.1}
  #allocation0 [shape = 'u32[]', space=smem, size = 0x4, offset = 0x4, fixed_abs, tag = 'smem constant byte address 0x4 - core index']
  #allocation1 [shape = 'u32[144,128]{1,0:T(1,128)}', space=vmem, size = 0x12000, scoped, tag = 'internal scratch']
  %s0 = inlined_call_operand.vmem [shape: f32[2,2,3,3,64], index: 0, kind: input, shape index: {}]
  %s1 = inlined_call_operand.vmem [shape: f32[3,3,64,32], index: 1, kind: input, shape index: {}]
  %s2 = inlined_call_operand.vmem [shape: f32[1,32], index: 2, kind: input, shape index: {}]
  %s3 = inlined_call_operand.vmem [shape: f32[3,32,32], index: 3, kind: input, shape index: {}]
  %s4 = inlined_call_operand.vmem [shape: f32[1,32], index: 4, kind: input, shape index: {}]
  %s5 = inlined_call_operand.vmem [shape: f32[2,4,4,4,32], index: 5, kind: input, shape index: {}]
  %s6 = inlined_call_operand.hbm [shape: f32[2,4,4,4,32], index: 6, kind: output, shape index: {0}]
  %s7 = inlined_call_operand.hbm [shape: f32[2,4,32], index: 7, kind: output, shape index: {1}]
  %8 = xla_tuple %s6, %s7
  %s9 = sld [smem:[#allocation0]]
  $region65: #{tpu_custom_call.1} parent=0
    _
  %s11 = ssub.s32 1, %s9
  %s12 = scalar_select 0, %s11, %s9
  $region1: #{tpu_custom_call.1} parent=0
    #allocation2 [shape = 'u8[65536]{0}', space=vmem, size = 0x10000, scoped, tag = 'output window, operand 0']
    #allocation3 [shape = 's32[2]{0}', space=sflag, size = 0x8, scoped, tag = 'scoped memory for tpu_custom_call.1']
    #allocation4 [shape = 'u8[4096]{0}', space=vmem, size = 0x1000, scoped, tag = 'output window, operand 1']
    #allocation5 [shape = 's32[2]{0}', space=sflag, size = 0x8, scoped, tag = 'scoped memory for tpu_custom_call.1']
    %13 = vsyncpa [#allocation3], 0
    %s14 = scalar_lea.sflag [#allocation3], 1
    %15 = vsyncpa %s14, 0
    %16 = vsyncpa [#allocation5], 0
    %s17 = scalar_lea.sflag [#allocation5], 1
    %18 = vsyncpa %s17, 0
    loop: start=0, step=1, limit=4
    $region2: #{tpu_custom_call.1} parent=1 // loop_pre_header
      _
    $region3: #{tpu_custom_call.1} parent=1 // loop_header
      %s20 = sphi 0, %s24
      %p21 = scmp.ge.s32.totalorder %s20, 4
      %s30 = sphi 0, %s32
      %s33 = sphi 0, %s30
      %s34 = sphi 0, %s33
      %s50 = sphi 0, %s34
      %s54 = sphi 0, %s54
      %s56 = sphi 0, %s54
      %s57 = sphi 0, %s56
      %s71 = sphi 0, %s57
      %s75 = sphi 0, %s75
      %s77 = sphi 0, %s75
      %s78 = sphi 0, %s77
      %s92 = sphi 0, %s78
      %s96 = sphi 0, %s96
      %s98 = sphi 0, %s96
      %s99 = sphi 0, %s98
      %s113 = sphi 0, %s99
      %s117 = sphi 0, %s117
      %s119 = sphi 0, %s117
      %s120 = sphi 0, %s119
      %s134 = sphi 0, %s120
      %s140 = sphi 0, %s142
      %s143 = sphi 0, %s140
      %s144 = sphi 0, %s143
      %s160 = sphi 0, %s144
      %s166 = sphi 0, %s168
      %s169 = sphi 0, %s166
      %s170 = sphi 0, %s169
      %s186 = sphi 0, %s170
      %s192 = sphi 0, %s194
      %s195 = sphi 0, %s192
      %s196 = sphi 0, %s195
      %s212 = sphi 0, %s196
    $region4: #{tpu_custom_call.1} parent=1 // loop_header_branch
      %23 = sbr.rel (%p21) target = $region8
    $region5: #{tpu_custom_call.1} parent=1 // loop_body
      %s25 = ssub.s32 %s20, 1
      %s26 = ssub.s32 %s20, 2
      %s27 = sadd.s32 %s20, 1
      %s28 = ssub.s32 %s20, %s27
      %p29 = scmp.eq.s32.totalorder %s28, 0
      %s31 = sadd.s32 %s30, 1
      %s32 = scalar_select %p29, %s30, %s31
      %p35 = pneg %p29
      %p36 = scmp.eq.s32.totalorder %s20, 1
      %p37 = por %p35, %p36
      %p38 = scmp.ne.s32.totalorder %s30, %s33
      %p39 = scmp.eq.s32.totalorder %s20, 0
      %p40 = por %p38, %p39
      %p41 = scmp.ne.s32.totalorder %s30, %s33
      %p42 = scmp.eq.s32.totalorder %s25, 1
      %p43 = por %p41, %p42
      %p44 = scmp.ne.s32.totalorder %s33, %s34
      %p45 = scmp.eq.s32.totalorder %s25, 0
      %p46 = por %p44, %p45
      %p47 = scmp.ne.s32.totalorder %s33, %s34
      %p48 = scmp.eq.s32.totalorder %s26, 1
      %p49 = por %p47, %p48
      %p51 = scmp.ne.s32.totalorder %s34, %s50
      %p52 = scmp.eq.s32.totalorder %s26, 0
      %p53 = por %p51, %p52
      %s55 = sadd.s32 %s54, 1
      %p58 = scmp.eq.s32.totalorder %s20, 1
      %p59 = scmp.ne.s32.totalorder %s54, %s56
      %p60 = scmp.eq.s32.totalorder %s20, 0
      %p61 = por %p59, %p60
      %p62 = scmp.ne.s32.totalorder %s54, %s56
      %p63 = scmp.eq.s32.totalorder %s25, 1
      %p64 = por %p62, %p63
      %p65 = scmp.ne.s32.totalorder %s56, %s57
      %p66 = scmp.eq.s32.totalorder %s25, 0
      %p67 = por %p65, %p66
      %p68 = scmp.ne.s32.totalorder %s56, %s57
      %p69 = scmp.eq.s32.totalorder %s26, 1
      %p70 = por %p68, %p69
      %p72 = scmp.ne.s32.totalorder %s57, %s71
      %p73 = scmp.eq.s32.totalorder %s26, 0
      %p74 = por %p72, %p73
      %s76 = sadd.s32 %s75, 1
      %p79 = scmp.eq.s32.totalorder %s20, 1
      %p80 = scmp.ne.s32.totalorder %s75, %s77
      %p81 = scmp.eq.s32.totalorder %s20, 0
      %p82 = por %p80, %p81
      %p83 = scmp.ne.s32.totalorder %s75, %s77
      %p84 = scmp.eq.s32.totalorder %s25, 1
      %p85 = por %p83, %p84
      %p86 = scmp.ne.s32.totalorder %s77, %s78
      %p87 = scmp.eq.s32.totalorder %s25, 0
      %p88 = por %p86, %p87
      %p89 = scmp.ne.s32.totalorder %s77, %s78
      %p90 = scmp.eq.s32.totalorder %s26, 1
      %p91 = por %p89, %p90
      %p93 = scmp.ne.s32.totalorder %s78, %s92
      %p94 = scmp.eq.s32.totalorder %s26, 0
      %p95 = por %p93, %p94
      %s97 = sadd.s32 %s96, 1
      %p100 = scmp.eq.s32.totalorder %s20, 1
      %p101 = scmp.ne.s32.totalorder %s96, %s98
      %p102 = scmp.eq.s32.totalorder %s20, 0
      %p103 = por %p101, %p102
      %p104 = scmp.ne.s32.totalorder %s96, %s98
      %p105 = scmp.eq.s32.totalorder %s25, 1
      %p106 = por %p104, %p105
      %p107 = scmp.ne.s32.totalorder %s98, %s99
      %p108 = scmp.eq.s32.totalorder %s25, 0
      %p109 = por %p107, %p108
      %p110 = scmp.ne.s32.totalorder %s98, %s99
      %p111 = scmp.eq.s32.totalorder %s26, 1
      %p112 = por %p110, %p111
      %p114 = scmp.ne.s32.totalorder %s99, %s113
      %p115 = scmp.eq.s32.totalorder %s26, 0
      %p116 = por %p114, %p115
      %s118 = sadd.s32 %s117, 1
      %p121 = scmp.eq.s32.totalorder %s20, 1
      %p122 = scmp.ne.s32.totalorder %s117, %s119
      %p123 = scmp.eq.s32.totalorder %s20, 0
      %p124 = por %p122, %p123
      %p125 = scmp.ne.s32.totalorder %s117, %s119
      %p126 = scmp.eq.s32.totalorder %s25, 1
      %p127 = por %p125, %p126
      %p128 = scmp.ne.s32.totalorder %s119, %s120
      %p129 = scmp.eq.s32.totalorder %s25, 0
      %p130 = por %p128, %p129
      %p131 = scmp.ne.s32.totalorder %s119, %s120
      %p132 = scmp.eq.s32.totalorder %s26, 1
      %p133 = por %p131, %p132
      %p135 = scmp.ne.s32.totalorder %s120, %s134
      %p136 = scmp.eq.s32.totalorder %s26, 0
      %p137 = por %p135, %p136
      %s138 = ssub.s32 %s20, %s27
      %p139 = scmp.eq.s32.totalorder %s138, 0
      %s141 = sadd.s32 %s140, 1
      %s142 = scalar_select %p139, %s140, %s141
      %p145 = pneg %p139
      %p146 = scmp.eq.s32.totalorder %s20, 1
      %p147 = por %p145, %p146
      %p148 = scmp.ne.s32.totalorder %s140, %s143
      %p149 = scmp.eq.s32.totalorder %s20, 0
      %p150 = por %p148, %p149
      %p151 = scmp.ne.s32.totalorder %s140, %s143
      %p152 = scmp.eq.s32.totalorder %s25, 1
      %p153 = por %p151, %p152
      %p154 = scmp.ne.s32.totalorder %s143, %s144
      %p155 = scmp.eq.s32.totalorder %s25, 0
      %p156 = por %p154, %p155
      %p157 = scmp.ne.s32.totalorder %s143, %s144
      %p158 = scmp.eq.s32.totalorder %s26, 1
      %p159 = por %p157, %p158
      %p161 = scmp.ne.s32.totalorder %s144, %s160
      %p162 = scmp.eq.s32.totalorder %s26, 0
      %p163 = por %p161, %p162
      %s164 = ssub.s32 %s20, %s27
      %p165 = scmp.eq.s32.totalorder %s164, 0
      %s167 = sadd.s32 %s166, 1
      %s168 = scalar_select %p165, %s166, %s167
      %p171 = pneg %p165
      %p172 = scmp.eq.s32.totalorder %s20, 1
      %p173 = por %p171, %p172
      %p174 = scmp.ne.s32.totalorder %s166, %s169
      %p175 = scmp.eq.s32.totalorder %s20, 0
      %p176 = por %p174, %p175
      %p177 = scmp.ne.s32.totalorder %s166, %s169
      %p178 = scmp.eq.s32.totalorder %s25, 1
      %p179 = por %p177, %p178
      %p180 = scmp.ne.s32.totalorder %s169, %s170
      %p181 = scmp.eq.s32.totalorder %s25, 0
      %p182 = por %p180, %p181
      %p183 = scmp.ne.s32.totalorder %s169, %s170
      %p184 = scmp.eq.s32.totalorder %s26, 1
      %p185 = por %p183, %p184
      %p187 = scmp.ne.s32.totalorder %s170, %s186
      %p188 = scmp.eq.s32.totalorder %s26, 0
      %p189 = por %p187, %p188
      %s190 = ssub.s32 %s20, %s27
      %p191 = scmp.eq.s32.totalorder %s190, 0
      %s193 = sadd.s32 %s192, 1
      %s194 = scalar_select %p191, %s192, %s193
      %p197 = pneg %p191
      %p198 = scmp.eq.s32.totalorder %s20, 1
      %p199 = por %p197, %p198
      %p200 = scmp.ne.s32.totalorder %s192, %s195
      %p201 = scmp.eq.s32.totalorder %s20, 0
      %p202 = por %p200, %p201
      %p203 = scmp.ne.s32.totalorder %s192, %s195
      %p204 = scmp.eq.s32.totalorder %s25, 1
      %p205 = por %p203, %p204
      %p206 = scmp.ne.s32.totalorder %s195, %s196
      %p207 = scmp.eq.s32.totalorder %s25, 0
      %p208 = por %p206, %p207
      %p209 = scmp.ne.s32.totalorder %s195, %s196
      %p210 = scmp.eq.s32.totalorder %s26, 1
      %p211 = por %p209, %p210
      %p213 = scmp.ne.s32.totalorder %s196, %s212
      %p214 = scmp.eq.s32.totalorder %s26, 0
      %p215 = por %p213, %p214
      %p216 = scmp.le.s32.totalorder 1, %s20
      %p217 = scmp.lt.s32.totalorder %s20, 3
      %p218 = pnand %p216, %p217
      %p219 = pneg %p218
      // Predicated region
      $region9: #{tpu_custom_call.1} parent=5 // pred_check
        _
      $region10: #{tpu_custom_call.1} parent=5 // pred_check_branch
        %221 = sbr.rel (%p218) target = $region12
      $region11: #{tpu_custom_call.1} parent=5 // pred_region
        %s222 = ssub.s32 %s20, 1
        // Predicated region
        $region13: #{tpu_custom_call.1} parent=11 // pred_check
          %p223 = pneg %p67
        $region14: #{tpu_custom_call.1} parent=11 // pred_check_branch
          %225 = sbr.rel (%p223) target = $region16
        $region15: #{tpu_custom_call.1} parent=11 // pred_region
          _
        $region16: #{tpu_custom_call.1} parent=11 // pred_fallthru
          _
        // Predicated region
        $region17: #{tpu_custom_call.1} parent=11 // pred_check
          %p226 = pneg %p88
        $region18: #{tpu_custom_call.1} parent=11 // pred_check_branch
          %228 = sbr.rel (%p226) target = $region20
        $region19: #{tpu_custom_call.1} parent=11 // pred_region
          _
        $region20: #{tpu_custom_call.1} parent=11 // pred_fallthru
          _
        // Predicated region
        $region21: #{tpu_custom_call.1} parent=11 // pred_check
          %p229 = pneg %p109
        $region22: #{tpu_custom_call.1} parent=11 // pred_check_branch
          %231 = sbr.rel (%p229) target = $region24
        $region23: #{tpu_custom_call.1} parent=11 // pred_region
          _
        $region24: #{tpu_custom_call.1} parent=11 // pred_fallthru
          _
        // Predicated region
        $region25: #{tpu_custom_call.1} parent=11 // pred_check
          %p232 = pneg %p130
        $region26: #{tpu_custom_call.1} parent=11 // pred_check_branch
          %234 = sbr.rel (%p232) target = $region28
        $region27: #{tpu_custom_call.1} parent=11 // pred_region
          _
        $region28: #{tpu_custom_call.1} parent=11 // pred_fallthru
          _
      $region12: #{tpu_custom_call.1} parent=5 // pred_fallthru
        _
      %p235 = scmp.lt.s32.totalorder %s20, 2
      // Predicated region
      $region29: #{tpu_custom_call.1} parent=5 // pred_check
        %p236 = pneg %p235
      $region30: #{tpu_custom_call.1} parent=5 // pred_check_branch
        %238 = sbr.rel (%p236) target = $region32
      $region31: #{tpu_custom_call.1} parent=5 // pred_region
        // Predicated region
        $region33: #{tpu_custom_call.1} parent=31 // pred_check
          %p239 = pneg %p40
        $region34: #{tpu_custom_call.1} parent=31 // pred_check_branch
          %241 = sbr.rel (%p239) target = $region36
        $region35: #{tpu_custom_call.1} parent=31 // pred_region
          %p242 = scmp.lt.s32.totalorder %s20, 1
          %s243 = scalar_select %p242, %s20, 1
          %s244 = smul.addr %s243, 6
          %s245 = smul.addr %s244, 4
          %s246 = scalar_lea.vmem %s0, %s245
        $region36: #{tpu_custom_call.1} parent=31 // pred_fallthru
          _
        // Predicated region
        $region37: #{tpu_custom_call.1} parent=31 // pred_check
          %p247 = pneg %p150
        $region38: #{tpu_custom_call.1} parent=31 // pred_check_branch
          %249 = sbr.rel (%p247) target = $region40
        $region39: #{tpu_custom_call.1} parent=31 // pred_region
          %p250 = scmp.lt.s32.totalorder %s20, 1
          %s251 = scalar_select %p250, %s20, 1
          %s252 = smul.addr %s251, 16
          %s253 = smul.addr %s252, 4
          %s254 = scalar_lea.vmem %s5, %s253
        $region40: #{tpu_custom_call.1} parent=31 // pred_fallthru
          _
      $region32: #{tpu_custom_call.1} parent=5 // pred_fallthru
        _
      %p255 = scmp.le.s32.totalorder 1, %s20
      %p256 = scmp.lt.s32.totalorder %s20, 3
      %p257 = pnand %p255, %p256
      %p258 = pneg %p257
      // Predicated region
      $region41: #{tpu_custom_call.1} parent=5 // pred_check
        _
      $region42: #{tpu_custom_call.1} parent=5 // pred_check_branch
        %260 = sbr.rel (%p257) target = $region44
      $region43: #{tpu_custom_call.1} parent=5 // pred_region
        %s261 = ssub.s32 %s20, 1
        %p262 = scmp.lt.s32.totalorder %s25, 1
        %s263 = scalar_select %p262, %s25, 1
        %s264 = smul.addr %s263, 6
        %s265 = smul.addr %s264, 4
        %s266 = scalar_lea.vmem %s0, %s265
        %p267 = pneg %p46
        %p268 = pneg %p43
        %p269 = pneg %p67
        %p270 = pneg %p64
        %p271 = pneg %p88
        %p272 = pneg %p85
        %p273 = pneg %p109
        %p274 = pneg %p106
        %p275 = pneg %p130
        %p276 = pneg %p127
        %p277 = scmp.lt.s32.totalorder %s25, 1
        %s278 = scalar_select %p277, %s25, 1
        %s279 = smul.addr %s278, 16
        %s280 = smul.addr %s279, 4
        %s281 = scalar_lea.vmem %s5, %s280
        %p282 = pneg %p156
        %p283 = pneg %p153
        %p284 = pneg %p182
        %p285 = pneg %p179
        %s286 = sand.u32 %s169, 1
        %s287 = scalar_lea.sflag [#allocation3], %s286
        %s288 = sand.u32 %s169, 1
        %s289 = smul.addr %s288, 64
        %s290 = scalar_lea.vmem [#allocation2], %s289
        %p291 = pneg %p208
        %p292 = pneg %p205
        %s293 = sand.u32 %s195, 1
        %s294 = scalar_lea.sflag [#allocation5], %s293
        %s295 = sand.u32 %s195, 1
        %s296 = smul.addr %s295, 4
        %s297 = scalar_lea.vmem [#allocation4], %s296
        %p298 = scmp.lt.s32.totalorder %s25, 1
        %s299 = scalar_select %p298, %s25, 1
        %s300 = smul.addr %s299, 6
        %s301 = smul.addr %s300, 4
        %s302 = scalar_lea.vmem %s0, %s301
        %p303 = scmp.lt.s32.totalorder %s25, 1
        %s304 = scalar_select %p303, %s25, 1
        %s305 = smul.addr %s304, 16
        %s306 = smul.addr %s305, 4
        %s307 = scalar_lea.vmem %s5, %s306
        %v308 = vld [vmem:[%s302] sm:$0x3]
        %v309 = vld [vmem:[%s302 + $0x4] sm:$0x3]
        %v310 = vld [vmem:[%s302 + $0xc] sm:$0x3]
        %v311 = vld [vmem:[%s302 + $0x10] sm:$0x3]
        %v312 = vld [vmem:[%s302 + $0x1] sm:$0x3]
        %v313 = vld [vmem:[%s302 + $0x5] sm:$0x3]
        %v314 = vld [vmem:[%s302 + $0xd] sm:$0x3]
        %v315 = vld [vmem:[%s302 + $0x11] sm:$0x3]
        %s316 = scalar_lea.vmem %s302, 4
        %v317 = vld [vmem:[%s316] sm:$0x3]
        %v318 = vld [vmem:[%s316 + $0x4] sm:$0x3]
        %v319 = vld [vmem:[%s316 + $0xc] sm:$0x3]
        %v320 = vld [vmem:[%s316 + $0x10] sm:$0x3]
        %v321 = vld [vmem:[%s316 + $0x1] sm:$0x3]
        %v322 = vld [vmem:[%s316 + $0x5] sm:$0x3]
        %v323 = vld [vmem:[%s316 + $0xd] sm:$0x3]
        %v324 = vld [vmem:[%s316 + $0x11] sm:$0x3]
        %v325 = vld [vmem:[%s2] sm:$0x1]
        %s326 = scalar_lea.vmem %s1, 256
        %v327 = vld [vmem:[%s326] sm:$0xff]
        %v328 = vld [vmem:[%s326 + $0x8] sm:$0xff]
        %v329 = vld [vmem:[%s326 + $0x10] sm:$0xff]
        %v330 = vld [vmem:[%s326 + $0x18] sm:$0xff]
        %v331 = vld [vmem:[%s326 + $0x20] sm:$0xff]
        %v332 = vld [vmem:[%s326 + $0x28] sm:$0xff]
        %v333 = vld [vmem:[%s326 + $0x30] sm:$0xff]
        %v334 = vld [vmem:[%s326 + $0x38] sm:$0xff]
        %v336 = vlaneseq
        %v337 = vshrl.u32 %v336, 7
        %v338 = vsub.s32 0, %v337
        %v339 = vrot.slane %v325, %v338
        %v345 = vcombine.low %v308, %v309
        %v346 = vcombine.low %v310, %v311
        %v348 = vunpack.c.l.s4 1983009808
        %v349 = vunpack.c.0.s8 %v348
        %v350 = vlaneseq
        %v351 = vshrl.u32 %v350, 7
        %v352 = vsub.s32 %v349, %v351
        %v353 = vrot.slane %v345, %v352
        %v355 = vunpack.c.l.s4 1983009808
        %v356 = vunpack.c.0.s8 %v355
        %v357 = vlaneseq
        %v358 = vshrl.u32 %v357, 7
        %v359 = vsub.s32 %v356, %v358
        %v360 = vrot.slane %v346, %v359
        %v361 = vcombine.low %v353, %v360
        %vm362 = vcmask 523264
        %v363 = vsel %vm362, %v361, 0
        %365 = vmatprep.subr.mxu0 0.0
        %366 = vmatpush1.msra.mxu0 0.0
        %367 = vmatprep.subr.mxu0 0.0
        %368 = vmatpush1.msra.mxu0 0.0
        %369 = vmatprep.subr.mxu0 0.0
        %370 = vmatpush1.msra.mxu0 0.0
        %371 = vmatprep.subr.mxu0 0.0
        %372 = vmatpush1.msra.mxu0 0.0
        %373 = vmatprep.subr.mxu0 0.0
        %374 = vmatpush1.msra.mxu0 0.0
        %375 = vmatprep.subr.mxu0 0.0
        %376 = vmatpush1.msra.mxu0 0.0
        %377 = vmatprep.subr.mxu0 0.0
        %378 = vmatpush1.msra.mxu0 0.0
        %379 = vmatprep.subr.mxu0 0.0
        %380 = vmatpush1.msra.mxu0 0.0
        %381 = vmatprep.subr.mxu0 0.0
        %382 = vmatpush1.msra.mxu0 %v334
        %383 = vmatprep.subr.mxu0 0.0
        %384 = vmatpush1.msra.mxu0 %v333
        %385 = vmatprep.subr.mxu0 0.0
        %386 = vmatpush1.msra.mxu0 %v332
        %387 = vmatprep.subr.mxu0 0.0
        %388 = vmatpush1.msra.mxu0 %v331
        %389 = vmatprep.subr.mxu0 0.0
        %390 = vmatpush1.msra.mxu0 %v330
        %391 = vmatprep.subr.mxu0 0.0
        %392 = vmatpush1.msra.mxu0 %v329
        %393 = vmatprep.subr.mxu0 0.0
        %394 = vmatpush1.msra.mxu0 %v328
        %395 = vmatprep.subr.mxu0 0.0
        %396 = vmatpush1.msra.mxu0 %v327
        %397 = vmatprep.subr.mxu0 0.0
        %398 = vmatpush2.msra.mxu0 0.0
        %399 = vmatprep.subr.mxu0 0.0
        %400 = vmatpush2.msra.mxu0 0.0
        %401 = vmatprep.subr.mxu0 0.0
        %402 = vmatpush2.msra.mxu0 0.0
        %403 = vmatprep.subr.mxu0 0.0
        %404 = vmatpush2.msra.mxu0 0.0
        %405 = vmatprep.subr.mxu0 0.0
        %406 = vmatpush2.msra.mxu0 0.0
        %407 = vmatprep.subr.mxu0 0.0
        %408 = vmatpush2.msra.mxu0 0.0
        %409 = vmatprep.subr.mxu0 0.0
        %410 = vmatpush2.msra.mxu0 0.0
        %411 = vmatprep.subr.mxu0 0.0
        %412 = vmatpush2.msra.mxu0 0.0
        %413 = vmatprep.subr.mxu0 0.0
        %414 = vmatpush2.msra.mxu0 0.0
        %415 = vmatprep.subr.mxu0 0.0
        %416 = vmatpush2.msra.mxu0 0.0
        %417 = vmatprep.subr.mxu0 0.0
        %418 = vmatpush2.msra.mxu0 0.0
        %419 = vmatprep.subr.mxu0 0.0
        %420 = vmatpush2.msra.mxu0 0.0
        %421 = vmatprep.subr.mxu0 0.0
        %422 = vmatpush2.msra.mxu0 0.0
        %423 = vmatprep.subr.mxu0 0.0
        %424 = vmatpush2.msra.mxu0 0.0
        %425 = vmatprep.subr.mxu0 0.0
        %426 = vmatpush2.msra.mxu0 0.0
        %427 = vmatprep.subr.mxu0 0.0
        %428 = vmatpush2.msra.mxu0 0.0
        %429 = vmatprep.mubr.f32.mxu0 0.0
        %430 = vmatmul.mubr.f32.gmra.mxu0 %v363
        %v431 = vpop.f32.mrf.mxu0
        %v432 = vadd.f32 %v339, %v431
        %v433 = vpop.f32.mrf.mxu0
        %434 = vdwg.mxu0
        %v435 = vmax.f32 %v432, 0.0
        %s436 = scalar_lea.vmem %s1, 320
        %v437 = vld [vmem:[%s436] sm:$0xff]
        %v438 = vld [vmem:[%s436 + $0x8] sm:$0xff]
        %v439 = vld [vmem:[%s436 + $0x10] sm:$0xff]
        %v440 = vld [vmem:[%s436 + $0x18] sm:$0xff]
        %v441 = vld [vmem:[%s436 + $0x20] sm:$0xff]
        %v442 = vld [vmem:[%s436 + $0x28] sm:$0xff]
        %v443 = vld [vmem:[%s436 + $0x30] sm:$0xff]
        %v444 = vld [vmem:[%s436 + $0x38] sm:$0xff]
        %s445 = scalar_lea.vmem %s1, 192
        %v446 = vld [vmem:[%s445] sm:$0xff]
        %v447 = vld [vmem:[%s445 + $0x8] sm:$0xff]
        %v448 = vld [vmem:[%s445 + $0x10] sm:$0xff]
        %v449 = vld [vmem:[%s445 + $0x18] sm:$0xff]
        %v450 = vld [vmem:[%s445 + $0x20] sm:$0xff]
        %v451 = vld [vmem:[%s445 + $0x28] sm:$0xff]
        %v452 = vld [vmem:[%s445 + $0x30] sm:$0xff]
        %v453 = vld [vmem:[%s445 + $0x38] sm:$0xff]
        %v458 = vcombine.low %v312, %v313
        %v459 = vcombine.low %v314, %v315
        %v461 = vunpack.c.l.s4 1983009808
        %v462 = vunpack.c.0.s8 %v461
        %v463 = vlaneseq
        %v464 = vshrl.u32 %v463, 7
        %v465 = vsub.s32 %v462, %v464
        %v466 = vrot.slane %v458, %v465
        %v468 = vunpack.c.l.s4 1983009808
        %v469 = vunpack.c.0.s8 %v468
        %v470 = vlaneseq
        %v471 = vshrl.u32 %v470, 7
        %v472 = vsub.s32 %v469, %v471
        %v473 = vrot.slane %v459, %v472
        %v474 = vcombine.low %v466, %v473
        %v475 = vsel %vm362, %v474, 0
        %477 = vmatprep.subr.mxu0 0.0
        %478 = vmatpush1.msra.mxu0 0.0
        %479 = vmatprep.subr.mxu0 0.0
        %480 = vmatpush1.msra.mxu0 0.0
        %481 = vmatprep.subr.mxu0 0.0
        %482 = vmatpush1.msra.mxu0 0.0
        %483 = vmatprep.subr.mxu0 0.0
        %484 = vmatpush1.msra.mxu0 0.0
        %485 = vmatprep.subr.mxu0 0.0
        %486 = vmatpush1.msra.mxu0 0.0
        %487 = vmatprep.subr.mxu0 0.0
        %488 = vmatpush1.msra.mxu0 0.0
        %489 = vmatprep.subr.mxu0 0.0
        %490 = vmatpush1.msra.mxu0 0.0
        %491 = vmatprep.subr.mxu0 0.0
        %492 = vmatpush1.msra.mxu0 0.0
        %493 = vmatprep.subr.mxu0 0.0
        %494 = vmatpush1.msra.mxu0 %v453
        %495 = vmatprep.subr.mxu0 0.0
        %496 = vmatpush1.msra.mxu0 %v452
        %497 = vmatprep.subr.mxu0 0.0
        %498 = vmatpush1.msra.mxu0 %v451
        %499 = vmatprep.subr.mxu0 0.0
        %500 = vmatpush1.msra.mxu0 %v450
        %501 = vmatprep.subr.mxu0 0.0
        %502 = vmatpush1.msra.mxu0 %v449
        %503 = vmatprep.subr.mxu0 0.0
        %504 = vmatpush1.msra.mxu0 %v448
        %505 = vmatprep.subr.mxu0 0.0
        %506 = vmatpush1.msra.mxu0 %v447
        %507 = vmatprep.subr.mxu0 0.0
        %508 = vmatpush1.msra.mxu0 %v446
        %509 = vmatprep.subr.mxu0 0.0
        %510 = vmatpush2.msra.mxu0 0.0
        %511 = vmatprep.subr.mxu0 0.0
        %512 = vmatpush2.msra.mxu0 0.0
        %513 = vmatprep.subr.mxu0 0.0
        %514 = vmatpush2.msra.mxu0 0.0
        %515 = vmatprep.subr.mxu0 0.0
        %516 = vmatpush2.msra.mxu0 0.0
        %517 = vmatprep.subr.mxu0 0.0
        %518 = vmatpush2.msra.mxu0 0.0
        %519 = vmatprep.subr.mxu0 0.0
        %520 = vmatpush2.msra.mxu0 0.0
        %521 = vmatprep.subr.mxu0 0.0
        %522 = vmatpush2.msra.mxu0 0.0
        %523 = vmatprep.subr.mxu0 0.0
        %524 = vmatpush2.msra.mxu0 0.0
        %525 = vmatprep.subr.mxu0 0.0
        %526 = vmatpush2.msra.mxu0 0.0
        %527 = vmatprep.subr.mxu0 0.0
        %528 = vmatpush2.msra.mxu0 0.0
        %529 = vmatprep.subr.mxu0 0.0
        %530 = vmatpush2.msra.mxu0 0.0
        %531 = vmatprep.subr.mxu0 0.0
        %532 = vmatpush2.msra.mxu0 0.0
        %533 = vmatprep.subr.mxu0 0.0
        %534 = vmatpush2.msra.mxu0 0.0
        %535 = vmatprep.subr.mxu0 0.0
        %536 = vmatpush2.msra.mxu0 0.0
        %537 = vmatprep.subr.mxu0 0.0
        %538 = vmatpush2.msra.mxu0 0.0
        %539 = vmatprep.subr.mxu0 0.0
        %540 = vmatpush2.msra.mxu0 0.0
        %541 = vmatprep.mubr.f32.mxu0 0.0
        %542 = vmatmul.mubr.f32.gmra.mxu0 %v475
        %v543 = vpop.f32.mrf.mxu0
        %v544 = vadd.f32 0.0, %v543
        %v545 = vpop.f32.mrf.mxu0
        %546 = vdwg.mxu0
        %547 = vmatprep.subr.mxu0 0.0
        %548 = vmatpush1.msra.mxu0 0.0
        %549 = vmatprep.subr.mxu0 0.0
        %550 = vmatpush1.msra.mxu0 0.0
        %551 = vmatprep.subr.mxu0 0.0
        %552 = vmatpush1.msra.mxu0 0.0
        %553 = vmatprep.subr.mxu0 0.0
        %554 = vmatpush1.msra.mxu0 0.0
        %555 = vmatprep.subr.mxu0 0.0
        %556 = vmatpush1.msra.mxu0 0.0
        %557 = vmatprep.subr.mxu0 0.0
        %558 = vmatpush1.msra.mxu0 0.0
        %559 = vmatprep.subr.mxu0 0.0
        %560 = vmatpush1.msra.mxu0 0.0
        %561 = vmatprep.subr.mxu0 0.0
        %562 = vmatpush1.msra.mxu0 0.0
        %563 = vmatprep.subr.mxu0 0.0
        %564 = vmatpush1.msra.mxu0 %v444
        %565 = vmatprep.subr.mxu0 0.0
        %566 = vmatpush1.msra.mxu0 %v443
        %567 = vmatprep.subr.mxu0 0.0
        %568 = vmatpush1.msra.mxu0 %v442
        %569 = vmatprep.subr.mxu0 0.0
        %570 = vmatpush1.msra.mxu0 %v441
        %571 = vmatprep.subr.mxu0 0.0
        %572 = vmatpush1.msra.mxu0 %v440
        %573 = vmatprep.subr.mxu0 0.0
        %574 = vmatpush1.msra.mxu0 %v439
        %575 = vmatprep.subr.mxu0 0.0
        %576 = vmatpush1.msra.mxu0 %v438
        %577 = vmatprep.subr.mxu0 0.0
        %578 = vmatpush1.msra.mxu0 %v437
        %579 = vmatprep.subr.mxu0 0.0
        %580 = vmatpush2.msra.mxu0 0.0
        %581 = vmatprep.subr.mxu0 0.0
        %582 = vmatpush2.msra.mxu0 0.0
        %583 = vmatprep.subr.mxu0 0.0
        %584 = vmatpush2.msra.mxu0 0.0
        %585 = vmatprep.subr.mxu0 0.0
        %586 = vmatpush2.msra.mxu0 0.0
        %587 = vmatprep.subr.mxu0 0.0
        %588 = vmatpush2.msra.mxu0 0.0
        %589 = vmatprep.subr.mxu0 0.0
        %590 = vmatpush2.msra.mxu0 0.0
        %591 = vmatprep.subr.mxu0 0.0
        %592 = vmatpush2.msra.mxu0 0.0
        %593 = vmatprep.subr.mxu0 0.0
        %594 = vmatpush2.msra.mxu0 0.0
        %595 = vmatprep.subr.mxu0 0.0
        %596 = vmatpush2.msra.mxu0 0.0
        %597 = vmatprep.subr.mxu0 0.0
        %598 = vmatpush2.msra.mxu0 0.0
        %599 = vmatprep.subr.mxu0 0.0
        %600 = vmatpush2.msra.mxu0 0.0
        %601 = vmatprep.subr.mxu0 0.0
        %602 = vmatpush2.msra.mxu0 0.0
        %603 = vmatprep.subr.mxu0 0.0
        %604 = vmatpush2.msra.mxu0 0.0
        %605 = vmatprep.subr.mxu0 0.0
        %606 = vmatpush2.msra.mxu0 0.0
        %607 = vmatprep.subr.mxu0 0.0
        %608 = vmatpush2.msra.mxu0 0.0
        %609 = vmatprep.subr.mxu0 0.0
        %610 = vmatpush2.msra.mxu0 0.0
        %611 = vmatprep.mubr.f32.mxu0 0.0
        %612 = vmatmul.mubr.f32.gmra.mxu0 %v363
        %v613 = vpop.f32.mrf.mxu0
        %v614 = vadd.f32 %v544, %v613
        %v615 = vpop.f32.mrf.mxu0
        %616 = vdwg.mxu0
        %v617 = vadd.f32 %v614, %v339
        %v618 = vmax.f32 %v617, 0.0
        %s619 = scalar_lea.vmem %s1, 448
        %v620 = vld [vmem:[%s619] sm:$0xff]
        %v621 = vld [vmem:[%s619 + $0x8] sm:$0xff]
        %v622 = vld [vmem:[%s619 + $0x10] sm:$0xff]
        %v623 = vld [vmem:[%s619 + $0x18] sm:$0xff]
        %v624 = vld [vmem:[%s619 + $0x20] sm:$0xff]
        %v625 = vld [vmem:[%s619 + $0x28] sm:$0xff]
        %v626 = vld [vmem:[%s619 + $0x30] sm:$0xff]
        %v627 = vld [vmem:[%s619 + $0x38] sm:$0xff]
        %s628 = scalar_lea.vmem %s1, 64
        %v629 = vld [vmem:[%s628] sm:$0xff]
        %v630 = vld [vmem:[%s628 + $0x8] sm:$0xff]
        %v631 = vld [vmem:[%s628 + $0x10] sm:$0xff]
        %v632 = vld [vmem:[%s628 + $0x18] sm:$0xff]
        %v633 = vld [vmem:[%s628 + $0x20] sm:$0xff]
        %v634 = vld [vmem:[%s628 + $0x28] sm:$0xff]
        %v635 = vld [vmem:[%s628 + $0x30] sm:$0xff]
        %v636 = vld [vmem:[%s628 + $0x38] sm:$0xff]
        %v641 = vcombine.low %v317, %v318
        %v642 = vcombine.low %v319, %v320
        %v644 = vunpack.c.l.s4 1983009808
        %v645 = vunpack.c.0.s8 %v644
        %v646 = vlaneseq
        %v647 = vshrl.u32 %v646, 7
        %v648 = vsub.s32 %v645, %v647
        %v649 = vrot.slane %v641, %v648
        %v651 = vunpack.c.l.s4 1983009808
        %v652 = vunpack.c.0.s8 %v651
        %v653 = vlaneseq
        %v654 = vshrl.u32 %v653, 7
        %v655 = vsub.s32 %v652, %v654
        %v656 = vrot.slane %v642, %v655
        %v657 = vcombine.low %v649, %v656
        %v658 = vsel %vm362, %v657, 0
        %660 = vmatprep.subr.mxu0 0.0
        %661 = vmatpush1.msra.mxu0 0.0
        %662 = vmatprep.subr.mxu0 0.0
        %663 = vmatpush1.msra.mxu0 0.0
        %664 = vmatprep.subr.mxu0 0.0
        %665 = vmatpush1.msra.mxu0 0.0
        %666 = vmatprep.subr.mxu0 0.0
        %667 = vmatpush1.msra.mxu0 0.0
        %668 = vmatprep.subr.mxu0 0.0
        %669 = vmatpush1.msra.mxu0 0.0
        %670 = vmatprep.subr.mxu0 0.0
        %671 = vmatpush1.msra.mxu0 0.0
        %672 = vmatprep.subr.mxu0 0.0
        %673 = vmatpush1.msra.mxu0 0.0
        %674 = vmatprep.subr.mxu0 0.0
        %675 = vmatpush1.msra.mxu0 0.0
        %676 = vmatprep.subr.mxu0 0.0
        %677 = vmatpush1.msra.mxu0 %v636
        %678 = vmatprep.subr.mxu0 0.0
        %679 = vmatpush1.msra.mxu0 %v635
        %680 = vmatprep.subr.mxu0 0.0
        %681 = vmatpush1.msra.mxu0 %v634
        %682 = vmatprep.subr.mxu0 0.0
        %683 = vmatpush1.msra.mxu0 %v633
        %684 = vmatprep.subr.mxu0 0.0
        %685 = vmatpush1.msra.mxu0 %v632
        %686 = vmatprep.subr.mxu0 0.0
        %687 = vmatpush1.msra.mxu0 %v631
        %688 = vmatprep.subr.mxu0 0.0
        %689 = vmatpush1.msra.mxu0 %v630
        %690 = vmatprep.subr.mxu0 0.0
        %691 = vmatpush1.msra.mxu0 %v629
        %692 = vmatprep.subr.mxu0 0.0
        %693 = vmatpush2.msra.mxu0 0.0
        %694 = vmatprep.subr.mxu0 0.0
        %695 = vmatpush2.msra.mxu0 0.0
        %696 = vmatprep.subr.mxu0 0.0
        %697 = vmatpush2.msra.mxu0 0.0
        %698 = vmatprep.subr.mxu0 0.0
        %699 = vmatpush2.msra.mxu0 0.0
        %700 = vmatprep.subr.mxu0 0.0
        %701 = vmatpush2.msra.mxu0 0.0
        %702 = vmatprep.subr.mxu0 0.0
        %703 = vmatpush2.msra.mxu0 0.0
        %704 = vmatprep.subr.mxu0 0.0
        %705 = vmatpush2.msra.mxu0 0.0
        %706 = vmatprep.subr.mxu0 0.0
        %707 = vmatpush2.msra.mxu0 0.0
        %708 = vmatprep.subr.mxu0 0.0
        %709 = vmatpush2.msra.mxu0 0.0
        %710 = vmatprep.subr.mxu0 0.0
        %711 = vmatpush2.msra.mxu0 0.0
        %712 = vmatprep.subr.mxu0 0.0
        %713 = vmatpush2.msra.mxu0 0.0
        %714 = vmatprep.subr.mxu0 0.0
        %715 = vmatpush2.msra.mxu0 0.0
        %716 = vmatprep.subr.mxu0 0.0
        %717 = vmatpush2.msra.mxu0 0.0
        %718 = vmatprep.subr.mxu0 0.0
        %719 = vmatpush2.msra.mxu0 0.0
        %720 = vmatprep.subr.mxu0 0.0
        %721 = vmatpush2.msra.mxu0 0.0
        %722 = vmatprep.subr.mxu0 0.0
        %723 = vmatpush2.msra.mxu0 0.0
        %724 = vmatprep.mubr.f32.mxu0 0.0
        %725 = vmatmul.mubr.f32.gmra.mxu0 %v658
        %v726 = vpop.f32.mrf.mxu0
        %v727 = vadd.f32 0.0, %v726
        %v728 = vpop.f32.mrf.mxu0
        %729 = vdwg.mxu0
        %730 = vmatprep.subr.mxu0 0.0
        %731 = vmatpush1.msra.mxu0 0.0
        %732 = vmatprep.subr.mxu0 0.0
        %733 = vmatpush1.msra.mxu0 0.0
        %734 = vmatprep.subr.mxu0 0.0
        %735 = vmatpush1.msra.mxu0 0.0
        %736 = vmatprep.subr.mxu0 0.0
        %737 = vmatpush1.msra.mxu0 0.0
        %738 = vmatprep.subr.mxu0 0.0
        %739 = vmatpush1.msra.mxu0 0.0
        %740 = vmatprep.subr.mxu0 0.0
        %741 = vmatpush1.msra.mxu0 0.0
        %742 = vmatprep.subr.mxu0 0.0
        %743 = vmatpush1.msra.mxu0 0.0
        %744 = vmatprep.subr.mxu0 0.0
        %745 = vmatpush1.msra.mxu0 0.0
        %746 = vmatprep.subr.mxu0 0.0
        %747 = vmatpush1.msra.mxu0 %v627
        %748 = vmatprep.subr.mxu0 0.0
        %749 = vmatpush1.msra.mxu0 %v626
        %750 = vmatprep.subr.mxu0 0.0
        %751 = vmatpush1.msra.mxu0 %v625
        %752 = vmatprep.subr.mxu0 0.0
        %753 = vmatpush1.msra.mxu0 %v624
        %754 = vmatprep.subr.mxu0 0.0
        %755 = vmatpush1.msra.mxu0 %v623
        %756 = vmatprep.subr.mxu0 0.0
        %757 = vmatpush1.msra.mxu0 %v622
        %758 = vmatprep.subr.mxu0 0.0
        %759 = vmatpush1.msra.mxu0 %v621
        %760 = vmatprep.subr.mxu0 0.0
        %761 = vmatpush1.msra.mxu0 %v620
        %762 = vmatprep.subr.mxu0 0.0
        %763 = vmatpush2.msra.mxu0 0.0
        %764 = vmatprep.subr.mxu0 0.0
        %765 = vmatpush2.msra.mxu0 0.0
        %766 = vmatprep.subr.mxu0 0.0
        %767 = vmatpush2.msra.mxu0 0.0
        %768 = vmatprep.subr.mxu0 0.0
        %769 = vmatpush2.msra.mxu0 0.0
        %770 = vmatprep.subr.mxu0 0.0
        %771 = vmatpush2.msra.mxu0 0.0
        %772 = vmatprep.subr.mxu0 0.0
        %773 = vmatpush2.msra.mxu0 0.0
        %774 = vmatprep.subr.mxu0 0.0
        %775 = vmatpush2.msra.mxu0 0.0
        %776 = vmatprep.subr.mxu0 0.0
        %777 = vmatpush2.msra.mxu0 0.0
        %778 = vmatprep.subr.mxu0 0.0
        %779 = vmatpush2.msra.mxu0 0.0
        %780 = vmatprep.subr.mxu0 0.0
        %781 = vmatpush2.msra.mxu0 0.0
        %782 = vmatprep.subr.mxu0 0.0
        %783 = vmatpush2.msra.mxu0 0.0
        %784 = vmatprep.subr.mxu0 0.0
        %785 = vmatpush2.msra.mxu0 0.0
        %786 = vmatprep.subr.mxu0 0.0
        %787 = vmatpush2.msra.mxu0 0.0
        %788 = vmatprep.subr.mxu0 0.0
        %789 = vmatpush2.msra.mxu0 0.0
        %790 = vmatprep.subr.mxu0 0.0
        %791 = vmatpush2.msra.mxu0 0.0
        %792 = vmatprep.subr.mxu0 0.0
        %793 = vmatpush2.msra.mxu0 0.0
        %794 = vmatprep.mubr.f32.mxu0 0.0
        %795 = vmatmul.mubr.f32.gmra.mxu0 %v363
        %v796 = vpop.f32.mrf.mxu0
        %v797 = vadd.f32 %v727, %v796
        %v798 = vpop.f32.mrf.mxu0
        %799 = vdwg.mxu0
        %v800 = vadd.f32 %v797, %v339
        %v801 = vmax.f32 %v800, 0.0
        %s802 = scalar_lea.vmem %s1, 512
        %v803 = vld [vmem:[%s802] sm:$0xff]
        %v804 = vld [vmem:[%s802 + $0x8] sm:$0xff]
        %v805 = vld [vmem:[%s802 + $0x10] sm:$0xff]
        %v806 = vld [vmem:[%s802 + $0x18] sm:$0xff]
        %v807 = vld [vmem:[%s802 + $0x20] sm:$0xff]
        %v808 = vld [vmem:[%s802 + $0x28] sm:$0xff]
        %v809 = vld [vmem:[%s802 + $0x30] sm:$0xff]
        %v810 = vld [vmem:[%s802 + $0x38] sm:$0xff]
        %s811 = scalar_lea.vmem %s1, 384
        %v812 = vld [vmem:[%s811] sm:$0xff]
        %v813 = vld [vmem:[%s811 + $0x8] sm:$0xff]
        %v814 = vld [vmem:[%s811 + $0x10] sm:$0xff]
        %v815 = vld [vmem:[%s811 + $0x18] sm:$0xff]
        %v816 = vld [vmem:[%s811 + $0x20] sm:$0xff]
        %v817 = vld [vmem:[%s811 + $0x28] sm:$0xff]
        %v818 = vld [vmem:[%s811 + $0x30] sm:$0xff]
        %v819 = vld [vmem:[%s811 + $0x38] sm:$0xff]
        %820 = vmatprep.subr.mxu0 0.0
        %821 = vmatpush1.msra.mxu0 0.0
        %822 = vmatprep.subr.mxu0 0.0
        %823 = vmatpush1.msra.mxu0 0.0
        %824 = vmatprep.subr.mxu0 0.0
        %825 = vmatpush1.msra.mxu0 0.0
        %826 = vmatprep.subr.mxu0 0.0
        %827 = vmatpush1.msra.mxu0 0.0
        %828 = vmatprep.subr.mxu0 0.0
        %829 = vmatpush1.msra.mxu0 0.0
        %830 = vmatprep.subr.mxu0 0.0
        %831 = vmatpush1.msra.mxu0 0.0
        %832 = vmatprep.subr.mxu0 0.0
        %833 = vmatpush1.msra.mxu0 0.0
        %834 = vmatprep.subr.mxu0 0.0
        %835 = vmatpush1.msra.mxu0 0.0
        %836 = vmatprep.subr.mxu0 0.0
        %837 = vmatpush1.msra.mxu0 %v819
        %838 = vmatprep.subr.mxu0 0.0
        %839 = vmatpush1.msra.mxu0 %v818
        %840 = vmatprep.subr.mxu0 0.0
        %841 = vmatpush1.msra.mxu0 %v817
        %842 = vmatprep.subr.mxu0 0.0
        %843 = vmatpush1.msra.mxu0 %v816
        %844 = vmatprep.subr.mxu0 0.0
        %845 = vmatpush1.msra.mxu0 %v815
        %846 = vmatprep.subr.mxu0 0.0
        %847 = vmatpush1.msra.mxu0 %v814
        %848 = vmatprep.subr.mxu0 0.0
        %849 = vmatpush1.msra.mxu0 %v813
        %850 = vmatprep.subr.mxu0 0.0
        %851 = vmatpush1.msra.mxu0 %v812
        %852 = vmatprep.subr.mxu0 0.0
        %853 = vmatpush2.msra.mxu0 0.0
        %854 = vmatprep.subr.mxu0 0.0
        %855 = vmatpush2.msra.mxu0 0.0
        %856 = vmatprep.subr.mxu0 0.0
        %857 = vmatpush2.msra.mxu0 0.0
        %858 = vmatprep.subr.mxu0 0.0
        %859 = vmatpush2.msra.mxu0 0.0
        %860 = vmatprep.subr.mxu0 0.0
        %861 = vmatpush2.msra.mxu0 0.0
        %862 = vmatprep.subr.mxu0 0.0
        %863 = vmatpush2.msra.mxu0 0.0
        %864 = vmatprep.subr.mxu0 0.0
        %865 = vmatpush2.msra.mxu0 0.0
        %866 = vmatprep.subr.mxu0 0.0
        %867 = vmatpush2.msra.mxu0 0.0
        %868 = vmatprep.subr.mxu0 0.0
        %869 = vmatpush2.msra.mxu0 0.0
        %870 = vmatprep.subr.mxu0 0.0
        %871 = vmatpush2.msra.mxu0 0.0
        %872 = vmatprep.subr.mxu0 0.0
        %873 = vmatpush2.msra.mxu0 0.0
        %874 = vmatprep.subr.mxu0 0.0
        %875 = vmatpush2.msra.mxu0 0.0
        %876 = vmatprep.subr.mxu0 0.0
        %877 = vmatpush2.msra.mxu0 0.0
        %878 = vmatprep.subr.mxu0 0.0
        %879 = vmatpush2.msra.mxu0 0.0
        %880 = vmatprep.subr.mxu0 0.0
        %881 = vmatpush2.msra.mxu0 0.0
        %882 = vmatprep.subr.mxu0 0.0
        %883 = vmatpush2.msra.mxu0 0.0
        %884 = vmatprep.mubr.f32.mxu0 0.0
        %885 = vmatmul.mubr.f32.gmra.mxu0 %v475
        %v886 = vpop.f32.mrf.mxu0
        %v887 = vadd.f32 0.0, %v886
        %v888 = vpop.f32.mrf.mxu0
        %889 = vdwg.mxu0
        %890 = vmatprep.subr.mxu0 0.0
        %891 = vmatpush1.msra.mxu0 0.0
        %892 = vmatprep.subr.mxu0 0.0
        %893 = vmatpush1.msra.mxu0 0.0
        %894 = vmatprep.subr.mxu0 0.0
        %895 = vmatpush1.msra.mxu0 0.0
        %896 = vmatprep.subr.mxu0 0.0
        %897 = vmatpush1.msra.mxu0 0.0
        %898 = vmatprep.subr.mxu0 0.0
        %899 = vmatpush1.msra.mxu0 0.0
        %900 = vmatprep.subr.mxu0 0.0
        %901 = vmatpush1.msra.mxu0 0.0
        %902 = vmatprep.subr.mxu0 0.0
        %903 = vmatpush1.msra.mxu0 0.0
        %904 = vmatprep.subr.mxu0 0.0
        %905 = vmatpush1.msra.mxu0 0.0
        %906 = vmatprep.subr.mxu0 0.0
        %907 = vmatpush1.msra.mxu0 %v810
        %908 = vmatprep.subr.mxu0 0.0
        %909 = vmatpush1.msra.mxu0 %v809
        %910 = vmatprep.subr.mxu0 0.0
        %911 = vmatpush1.msra.mxu0 %v808
        %912 = vmatprep.subr.mxu0 0.0
        %913 = vmatpush1.msra.mxu0 %v807
        %914 = vmatprep.subr.mxu0 0.0
        %915 = vmatpush1.msra.mxu0 %v806
        %916 = vmatprep.subr.mxu0 0.0
        %917 = vmatpush1.msra.mxu0 %v805
        %918 = vmatprep.subr.mxu0 0.0
        %919 = vmatpush1.msra.mxu0 %v804
        %920 = vmatprep.subr.mxu0 0.0
        %921 = vmatpush1.msra.mxu0 %v803
        %922 = vmatprep.subr.mxu0 0.0
        %923 = vmatpush2.msra.mxu0 0.0
        %924 = vmatprep.subr.mxu0 0.0
        %925 = vmatpush2.msra.mxu0 0.0
        %926 = vmatprep.subr.mxu0 0.0
        %927 = vmatpush2.msra.mxu0 0.0
        %928 = vmatprep.subr.mxu0 0.0
        %929 = vmatpush2.msra.mxu0 0.0
        %930 = vmatprep.subr.mxu0 0.0
        %931 = vmatpush2.msra.mxu0 0.0
        %932 = vmatprep.subr.mxu0 0.0
        %933 = vmatpush2.msra.mxu0 0.0
        %934 = vmatprep.subr.mxu0 0.0
        %935 = vmatpush2.msra.mxu0 0.0
        %936 = vmatprep.subr.mxu0 0.0
        %937 = vmatpush2.msra.mxu0 0.0
        %938 = vmatprep.subr.mxu0 0.0
        %939 = vmatpush2.msra.mxu0 0.0
        %940 = vmatprep.subr.mxu0 0.0
        %941 = vmatpush2.msra.mxu0 0.0
        %942 = vmatprep.subr.mxu0 0.0
        %943 = vmatpush2.msra.mxu0 0.0
        %944 = vmatprep.subr.mxu0 0.0
        %945 = vmatpush2.msra.mxu0 0.0
        %946 = vmatprep.subr.mxu0 0.0
        %947 = vmatpush2.msra.mxu0 0.0
        %948 = vmatprep.subr.mxu0 0.0
        %949 = vmatpush2.msra.mxu0 0.0
        %950 = vmatprep.subr.mxu0 0.0
        %951 = vmatpush2.msra.mxu0 0.0
        %952 = vmatprep.subr.mxu0 0.0
        %953 = vmatpush2.msra.mxu0 0.0
        %954 = vmatprep.mubr.f32.mxu0 0.0
        %955 = vmatmul.mubr.f32.gmra.mxu0 %v363
        %v956 = vpop.f32.mrf.mxu0
        %v957 = vadd.f32 %v887, %v956
        %v958 = vpop.f32.mrf.mxu0
        %959 = vdwg.mxu0
        %s960 = scalar_lea.vmem %s1, 128
        %v961 = vld [vmem:[%s960] sm:$0xff]
        %v962 = vld [vmem:[%s960 + $0x8] sm:$0xff]
        %v963 = vld [vmem:[%s960 + $0x10] sm:$0xff]
        %v964 = vld [vmem:[%s960 + $0x18] sm:$0xff]
        %v965 = vld [vmem:[%s960 + $0x20] sm:$0xff]
        %v966 = vld [vmem:[%s960 + $0x28] sm:$0xff]
        %v967 = vld [vmem:[%s960 + $0x30] sm:$0xff]
        %v968 = vld [vmem:[%s960 + $0x38] sm:$0xff]
        %969 = vmatprep.subr.mxu0 0.0
        %970 = vmatpush1.msra.mxu0 0.0
        %971 = vmatprep.subr.mxu0 0.0
        %972 = vmatpush1.msra.mxu0 0.0
        %973 = vmatprep.subr.mxu0 0.0
        %974 = vmatpush1.msra.mxu0 0.0
        %975 = vmatprep.subr.mxu0 0.0
        %976 = vmatpush1.msra.mxu0 0.0
        %977 = vmatprep.subr.mxu0 0.0
        %978 = vmatpush1.msra.mxu0 0.0
        %979 = vmatprep.subr.mxu0 0.0
        %980 = vmatpush1.msra.mxu0 0.0
        %981 = vmatprep.subr.mxu0 0.0
        %982 = vmatpush1.msra.mxu0 0.0
        %983 = vmatprep.subr.mxu0 0.0
        %984 = vmatpush1.msra.mxu0 0.0
        %985 = vmatprep.subr.mxu0 0.0
        %986 = vmatpush1.msra.mxu0 %v968
        %987 = vmatprep.subr.mxu0 0.0
        %988 = vmatpush1.msra.mxu0 %v967
        %989 = vmatprep.subr.mxu0 0.0
        %990 = vmatpush1.msra.mxu0 %v966
        %991 = vmatprep.subr.mxu0 0.0
        %992 = vmatpush1.msra.mxu0 %v965
        %993 = vmatprep.subr.mxu0 0.0
        %994 = vmatpush1.msra.mxu0 %v964
        %995 = vmatprep.subr.mxu0 0.0
        %996 = vmatpush1.msra.mxu0 %v963
        %997 = vmatprep.subr.mxu0 0.0
        %998 = vmatpush1.msra.mxu0 %v962
        %999 = vmatprep.subr.mxu0 0.0
        %1000 = vmatpush1.msra.mxu0 %v961
        %1001 = vmatprep.subr.mxu0 0.0
        %1002 = vmatpush2.msra.mxu0 0.0
        %1003 = vmatprep.subr.mxu0 0.0
        %1004 = vmatpush2.msra.mxu0 0.0
        %1005 = vmatprep.subr.mxu0 0.0
        %1006 = vmatpush2.msra.mxu0 0.0
        %1007 = vmatprep.subr.mxu0 0.0
        %1008 = vmatpush2.msra.mxu0 0.0
        %1009 = vmatprep.subr.mxu0 0.0
        %1010 = vmatpush2.msra.mxu0 0.0
        %1011 = vmatprep.subr.mxu0 0.0
        %1012 = vmatpush2.msra.mxu0 0.0
        %1013 = vmatprep.subr.mxu0 0.0
        %1014 = vmatpush2.msra.mxu0 0.0
        %1015 = vmatprep.subr.mxu0 0.0
        %1016 = vmatpush2.msra.mxu0 0.0
        %1017 = vmatprep.subr.mxu0 0.0
        %1018 = vmatpush2.msra.mxu0 0.0
        %1019 = vmatprep.subr.mxu0 0.0
        %1020 = vmatpush2.msra.mxu0 0.0
        %1021 = vmatprep.subr.mxu0 0.0
        %1022 = vmatpush2.msra.mxu0 0.0
        %1023 = vmatprep.subr.mxu0 0.0
        %1024 = vmatpush2.msra.mxu0 0.0
        %1025 = vmatprep.subr.mxu0 0.0
        %1026 = vmatpush2.msra.mxu0 0.0
        %1027 = vmatprep.subr.mxu0 0.0
        %1028 = vmatpush2.msra.mxu0 0.0
        %1029 = vmatprep.subr.mxu0 0.0
        %1030 = vmatpush2.msra.mxu0 0.0
        %1031 = vmatprep.subr.mxu0 0.0
        %1032 = vmatpush2.msra.mxu0 0.0
        %1033 = vmatprep.mubr.f32.mxu0 0.0
        %1034 = vmatmul.mubr.f32.gmra.mxu0 %v658
        %v1035 = vpop.f32.mrf.mxu0
        %v1036 = vadd.f32 0.0, %v1035
        %v1037 = vpop.f32.mrf.mxu0
        %1038 = vdwg.mxu0
        %v1039 = vadd.f32 %v957, %v1036
        %v1040 = vld [vmem:[%s1] sm:$0xff]
        %v1041 = vld [vmem:[%s1 + $0x8] sm:$0xff]
        %v1042 = vld [vmem:[%s1 + $0x10] sm:$0xff]
        %v1043 = vld [vmem:[%s1 + $0x18] sm:$0xff]
        %v1044 = vld [vmem:[%s1 + $0x20] sm:$0xff]
        %v1045 = vld [vmem:[%s1 + $0x28] sm:$0xff]
        %v1046 = vld [vmem:[%s1 + $0x30] sm:$0xff]
        %v1047 = vld [vmem:[%s1 + $0x38] sm:$0xff]
        %v1052 = vcombine.low %v321, %v322
        %v1053 = vcombine.low %v323, %v324
        %v1055 = vunpack.c.l.s4 1983009808
        %v1056 = vunpack.c.0.s8 %v1055
        %v1057 = vlaneseq
        %v1058 = vshrl.u32 %v1057, 7
        %v1059 = vsub.s32 %v1056, %v1058
        %v1060 = vrot.slane %v1052, %v1059
        %v1062 = vunpack.c.l.s4 1983009808
        %v1063 = vunpack.c.0.s8 %v1062
        %v1064 = vlaneseq
        %v1065 = vshrl.u32 %v1064, 7
        %v1066 = vsub.s32 %v1063, %v1065
        %v1067 = vrot.slane %v1053, %v1066
        %v1068 = vcombine.low %v1060, %v1067
        %v1069 = vsel %vm362, %v1068, 0
        %1071 = vmatprep.subr.mxu0 0.0
        %1072 = vmatpush1.msra.mxu0 0.0
        %1073 = vmatprep.subr.mxu0 0.0
        %1074 = vmatpush1.msra.mxu0 0.0
        %1075 = vmatprep.subr.mxu0 0.0
        %1076 = vmatpush1.msra.mxu0 0.0
        %1077 = vmatprep.subr.mxu0 0.0
        %1078 = vmatpush1.msra.mxu0 0.0
        %1079 = vmatprep.subr.mxu0 0.0
        %1080 = vmatpush1.msra.mxu0 0.0
        %1081 = vmatprep.subr.mxu0 0.0
        %1082 = vmatpush1.msra.mxu0 0.0
        %1083 = vmatprep.subr.mxu0 0.0
        %1084 = vmatpush1.msra.mxu0 0.0
        %1085 = vmatprep.subr.mxu0 0.0
        %1086 = vmatpush1.msra.mxu0 0.0
        %1087 = vmatprep.subr.mxu0 0.0
        %1088 = vmatpush1.msra.mxu0 %v1047
        %1089 = vmatprep.subr.mxu0 0.0
        %1090 = vmatpush1.msra.mxu0 %v1046
        %1091 = vmatprep.subr.mxu0 0.0
        %1092 = vmatpush1.msra.mxu0 %v1045
        %1093 = vmatprep.subr.mxu0 0.0
        %1094 = vmatpush1.msra.mxu0 %v1044
        %1095 = vmatprep.subr.mxu0 0.0
        %1096 = vmatpush1.msra.mxu0 %v1043
        %1097 = vmatprep.subr.mxu0 0.0
        %1098 = vmatpush1.msra.mxu0 %v1042
        %1099 = vmatprep.subr.mxu0 0.0
        %1100 = vmatpush1.msra.mxu0 %v1041
        %1101 = vmatprep.subr.mxu0 0.0
        %1102 = vmatpush1.msra.mxu0 %v1040
        %1103 = vmatprep.subr.mxu0 0.0
        %1104 = vmatpush2.msra.mxu0 0.0
        %1105 = vmatprep.subr.mxu0 0.0
        %1106 = vmatpush2.msra.mxu0 0.0
        %1107 = vmatprep.subr.mxu0 0.0
        %1108 = vmatpush2.msra.mxu0 0.0
        %1109 = vmatprep.subr.mxu0 0.0
        %1110 = vmatpush2.msra.mxu0 0.0
        %1111 = vmatprep.subr.mxu0 0.0
        %1112 = vmatpush2.msra.mxu0 0.0
        %1113 = vmatprep.subr.mxu0 0.0
        %1114 = vmatpush2.msra.mxu0 0.0
        %1115 = vmatprep.subr.mxu0 0.0
        %1116 = vmatpush2.msra.mxu0 0.0
        %1117 = vmatprep.subr.mxu0 0.0
        %1118 = vmatpush2.msra.mxu0 0.0
        %1119 = vmatprep.subr.mxu0 0.0
        %1120 = vmatpush2.msra.mxu0 0.0
        %1121 = vmatprep.subr.mxu0 0.0
        %1122 = vmatpush2.msra.mxu0 0.0
        %1123 = vmatprep.subr.mxu0 0.0
        %1124 = vmatpush2.msra.mxu0 0.0
        %1125 = vmatprep.subr.mxu0 0.0
        %1126 = vmatpush2.msra.mxu0 0.0
        %1127 = vmatprep.subr.mxu0 0.0
        %1128 = vmatpush2.msra.mxu0 0.0
        %1129 = vmatprep.subr.mxu0 0.0
        %1130 = vmatpush2.msra.mxu0 0.0
        %1131 = vmatprep.subr.mxu0 0.0
        %1132 = vmatpush2.msra.mxu0 0.0
        %1133 = vmatprep.subr.mxu0 0.0
        %1134 = vmatpush2.msra.mxu0 0.0
        %1135 = vmatprep.mubr.f32.mxu0 0.0
        %1136 = vmatmul.mubr.f32.gmra.mxu0 %v1069
        %v1137 = vpop.f32.mrf.mxu0
        %v1138 = vadd.f32 0.0, %v1137
        %v1139 = vpop.f32.mrf.mxu0
        %1140 = vdwg.mxu0
        %v1141 = vadd.f32 %v1039, %v1138
        %v1142 = vadd.f32 %v1141, %v339
        %v1143 = vmax.f32 %v1142, 0.0
        %v1145 = vcombine.high %v435, %v435
        %v1147 = vunpack.c.l.s4 1966171168
        %v1148 = vunpack.c.0.s8 %v1147
        %v1149 = vlaneseq
        %v1150 = vshrl.u32 %v1149, 7
        %v1151 = vsub.s32 %v1148, %v1150
        %v1152 = vrot.slane %v435, %v1151
        %v1154 = vunpack.c.l.s4 1966171168
        %v1155 = vunpack.c.0.s8 %v1154
        %v1156 = vlaneseq
        %v1157 = vshrl.u32 %v1156, 7
        %v1158 = vsub.s32 %v1155, %v1157
        %v1159 = vrot.slane %v1145, %v1158
        %v1160 = vcombine.high %v1152, %v1152
        %v1161 = vcombine.high %v1159, %v1159
        %v1163 = vunpack.c.l.s4 1966171168
        %v1164 = vunpack.c.0.s8 %v1163
        %v1165 = vlaneseq
        %v1166 = vshrl.u32 %v1165, 7
        %v1167 = vsub.s32 %v1164, %v1166
        %v1168 = vrot.slane %v1152, %v1167
        %v1170 = vunpack.c.l.s4 1966171168
        %v1171 = vunpack.c.0.s8 %v1170
        %v1172 = vlaneseq
        %v1173 = vshrl.u32 %v1172, 7
        %v1174 = vsub.s32 %v1171, %v1173
        %v1175 = vrot.slane %v1159, %v1174
        %v1177 = vunpack.c.l.s4 1966171168
        %v1178 = vunpack.c.0.s8 %v1177
        %v1179 = vlaneseq
        %v1180 = vshrl.u32 %v1179, 7
        %v1181 = vsub.s32 %v1178, %v1180
        %v1182 = vrot.slane %v1160, %v1181
        %v1184 = vunpack.c.l.s4 1966171168
        %v1185 = vunpack.c.0.s8 %v1184
        %v1186 = vlaneseq
        %v1187 = vshrl.u32 %v1186, 7
        %v1188 = vsub.s32 %v1185, %v1187
        %v1189 = vrot.slane %v1161, %v1188
        %v1190 = vcombine.high %v1168, %v1168
        %v1191 = vcombine.high %v1175, %v1175
        %v1192 = vcombine.high %v1182, %v1182
        %v1193 = vcombine.high %v1189, %v1189
        %v1203 = vcombine.high %v618, %v618
        %v1205 = vunpack.c.l.s4 1966171168
        %v1206 = vunpack.c.0.s8 %v1205
        %v1207 = vlaneseq
        %v1208 = vshrl.u32 %v1207, 7
        %v1209 = vsub.s32 %v1206, %v1208
        %v1210 = vrot.slane %v618, %v1209
        %v1212 = vunpack.c.l.s4 1966171168
        %v1213 = vunpack.c.0.s8 %v1212
        %v1214 = vlaneseq
        %v1215 = vshrl.u32 %v1214, 7
        %v1216 = vsub.s32 %v1213, %v1215
        %v1217 = vrot.slane %v1203, %v1216
        %v1218 = vcombine.high %v1210, %v1210
        %v1219 = vcombine.high %v1217, %v1217
        %v1221 = vunpack.c.l.s4 1966171168
        %v1222 = vunpack.c.0.s8 %v1221
        %v1223 = vlaneseq
        %v1224 = vshrl.u32 %v1223, 7
        %v1225 = vsub.s32 %v1222, %v1224
        %v1226 = vrot.slane %v1210, %v1225
        %v1228 = vunpack.c.l.s4 1966171168
        %v1229 = vunpack.c.0.s8 %v1228
        %v1230 = vlaneseq
        %v1231 = vshrl.u32 %v1230, 7
        %v1232 = vsub.s32 %v1229, %v1231
        %v1233 = vrot.slane %v1217, %v1232
        %v1235 = vunpack.c.l.s4 1966171168
        %v1236 = vunpack.c.0.s8 %v1235
        %v1237 = vlaneseq
        %v1238 = vshrl.u32 %v1237, 7
        %v1239 = vsub.s32 %v1236, %v1238
        %v1240 = vrot.slane %v1218, %v1239
        %v1242 = vunpack.c.l.s4 1966171168
        %v1243 = vunpack.c.0.s8 %v1242
        %v1244 = vlaneseq
        %v1245 = vshrl.u32 %v1244, 7
        %v1246 = vsub.s32 %v1243, %v1245
        %v1247 = vrot.slane %v1219, %v1246
        %v1248 = vcombine.high %v1226, %v1226
        %v1249 = vcombine.high %v1233, %v1233
        %v1250 = vcombine.high %v1240, %v1240
        %v1251 = vcombine.high %v1247, %v1247
        %v1252 = vlaneseq
        %v1253 = vshrl.u32 %v1252, 7
        %v1254 = vsub.s32 0, %v1253
        %v1255 = vrot.slane %v1226, %v1254
        %v1256 = vlaneseq
        %v1257 = vshrl.u32 %v1256, 7
        %v1258 = vsub.s32 0, %v1257
        %v1259 = vrot.slane %v1240, %v1258
        %v1260 = vlaneseq
        %v1261 = vshrl.u32 %v1260, 7
        %v1262 = vsub.s32 0, %v1261
        %v1263 = vrot.slane %v1248, %v1262
        %v1264 = vlaneseq
        %v1265 = vshrl.u32 %v1264, 7
        %v1266 = vsub.s32 0, %v1265
        %v1267 = vrot.slane %v1250, %v1266
        %v1268 = vlaneseq
        %v1269 = vshrl.u32 %v1268, 7
        %v1270 = vsub.s32 0, %v1269
        %v1271 = vrot.slane %v1233, %v1270
        %v1272 = vlaneseq
        %v1273 = vshrl.u32 %v1272, 7
        %v1274 = vsub.s32 0, %v1273
        %v1275 = vrot.slane %v1247, %v1274
        %v1276 = vlaneseq
        %v1277 = vshrl.u32 %v1276, 7
        %v1278 = vsub.s32 0, %v1277
        %v1279 = vrot.slane %v1249, %v1278
        %v1280 = vlaneseq
        %v1281 = vshrl.u32 %v1280, 7
        %v1282 = vsub.s32 0, %v1281
        %v1283 = vrot.slane %v1251, %v1282
        %vm1292 = vcmask 1040384
        %v1293 = vsel %vm1292, %v1168, %v1255
        %v1294 = vsel %vm1292, %v1182, %v1259
        %v1295 = vsel %vm1292, %v1190, %v1263
        %v1296 = vsel %vm1292, %v1192, %v1267
        %v1297 = vsel %vm1292, %v1175, %v1271
        %v1298 = vsel %vm1292, %v1189, %v1275
        %v1299 = vsel %vm1292, %v1191, %v1279
        %v1300 = vsel %vm1292, %v1193, %v1283
        %v1302 = vcombine.high %v801, %v801
        %v1304 = vunpack.c.l.s4 1966171168
        %v1305 = vunpack.c.0.s8 %v1304
        %v1306 = vlaneseq
        %v1307 = vshrl.u32 %v1306, 7
        %v1308 = vsub.s32 %v1305, %v1307
        %v1309 = vrot.slane %v801, %v1308
        %v1311 = vunpack.c.l.s4 1966171168
        %v1312 = vunpack.c.0.s8 %v1311
        %v1313 = vlaneseq
        %v1314 = vshrl.u32 %v1313, 7
        %v1315 = vsub.s32 %v1312, %v1314
        %v1316 = vrot.slane %v1302, %v1315
        %v1317 = vcombine.high %v1309, %v1309
        %v1318 = vcombine.high %v1316, %v1316
        %v1320 = vunpack.c.l.s4 1966171168
        %v1321 = vunpack.c.0.s8 %v1320
        %v1322 = vlaneseq
        %v1323 = vshrl.u32 %v1322, 7
        %v1324 = vsub.s32 %v1321, %v1323
        %v1325 = vrot.slane %v1309, %v1324
        %v1327 = vunpack.c.l.s4 1966171168
        %v1328 = vunpack.c.0.s8 %v1327
        %v1329 = vlaneseq
        %v1330 = vshrl.u32 %v1329, 7
        %v1331 = vsub.s32 %v1328, %v1330
        %v1332 = vrot.slane %v1316, %v1331
        %v1334 = vunpack.c.l.s4 1966171168
        %v1335 = vunpack.c.0.s8 %v1334
        %v1336 = vlaneseq
        %v1337 = vshrl.u32 %v1336, 7
        %v1338 = vsub.s32 %v1335, %v1337
        %v1339 = vrot.slane %v1317, %v1338
        %v1341 = vunpack.c.l.s4 1966171168
        %v1342 = vunpack.c.0.s8 %v1341
        %v1343 = vlaneseq
        %v1344 = vshrl.u32 %v1343, 7
        %v1345 = vsub.s32 %v1342, %v1344
        %v1346 = vrot.slane %v1318, %v1345
        %v1347 = vcombine.high %v1325, %v1325
        %v1348 = vcombine.high %v1332, %v1332
        %v1349 = vcombine.high %v1339, %v1339
        %v1350 = vcombine.high %v1346, %v1346
        %v1360 = vcombine.high %v1143, %v1143
        %v1362 = vunpack.c.l.s4 1966171168
        %v1363 = vunpack.c.0.s8 %v1362
        %v1364 = vlaneseq
        %v1365 = vshrl.u32 %v1364, 7
        %v1366 = vsub.s32 %v1363, %v1365
        %v1367 = vrot.slane %v1143, %v1366
        %v1369 = vunpack.c.l.s4 1966171168
        %v1370 = vunpack.c.0.s8 %v1369
        %v1371 = vlaneseq
        %v1372 = vshrl.u32 %v1371, 7
        %v1373 = vsub.s32 %v1370, %v1372
        %v1374 = vrot.slane %v1360, %v1373
        %v1375 = vcombine.high %v1367, %v1367
        %v1376 = vcombine.high %v1374, %v1374
        %v1378 = vunpack.c.l.s4 1966171168
        %v1379 = vunpack.c.0.s8 %v1378
        %v1380 = vlaneseq
        %v1381 = vshrl.u32 %v1380, 7
        %v1382 = vsub.s32 %v1379, %v1381
        %v1383 = vrot.slane %v1367, %v1382
        %v1385 = vunpack.c.l.s4 1966171168
        %v1386 = vunpack.c.0.s8 %v1385
        %v1387 = vlaneseq
        %v1388 = vshrl.u32 %v1387, 7
        %v1389 = vsub.s32 %v1386, %v1388
        %v1390 = vrot.slane %v1374, %v1389
        %v1392 = vunpack.c.l.s4 1966171168
        %v1393 = vunpack.c.0.s8 %v1392
        %v1394 = vlaneseq
        %v1395 = vshrl.u32 %v1394, 7
        %v1396 = vsub.s32 %v1393, %v1395
        %v1397 = vrot.slane %v1375, %v1396
        %v1399 = vunpack.c.l.s4 1966171168
        %v1400 = vunpack.c.0.s8 %v1399
        %v1401 = vlaneseq
        %v1402 = vshrl.u32 %v1401, 7
        %v1403 = vsub.s32 %v1400, %v1402
        %v1404 = vrot.slane %v1376, %v1403
        %v1405 = vcombine.high %v1383, %v1383
        %v1406 = vcombine.high %v1390, %v1390
        %v1407 = vcombine.high %v1397, %v1397
        %v1408 = vcombine.high %v1404, %v1404
        %v1409 = vlaneseq
        %v1410 = vshrl.u32 %v1409, 7
        %v1411 = vsub.s32 0, %v1410
        %v1412 = vrot.slane %v1383, %v1411
        %v1413 = vlaneseq
        %v1414 = vshrl.u32 %v1413, 7
        %v1415 = vsub.s32 0, %v1414
        %v1416 = vrot.slane %v1397, %v1415
        %v1417 = vlaneseq
        %v1418 = vshrl.u32 %v1417, 7
        %v1419 = vsub.s32 0, %v1418
        %v1420 = vrot.slane %v1405, %v1419
        %v1421 = vlaneseq
        %v1422 = vshrl.u32 %v1421, 7
        %v1423 = vsub.s32 0, %v1422
        %v1424 = vrot.slane %v1407, %v1423
        %v1425 = vlaneseq
        %v1426 = vshrl.u32 %v1425, 7
        %v1427 = vsub.s32 0, %v1426
        %v1428 = vrot.slane %v1390, %v1427
        %v1429 = vlaneseq
        %v1430 = vshrl.u32 %v1429, 7
        %v1431 = vsub.s32 0, %v1430
        %v1432 = vrot.slane %v1404, %v1431
        %v1433 = vlaneseq
        %v1434 = vshrl.u32 %v1433, 7
        %v1435 = vsub.s32 0, %v1434
        %v1436 = vrot.slane %v1406, %v1435
        %v1437 = vlaneseq
        %v1438 = vshrl.u32 %v1437, 7
        %v1439 = vsub.s32 0, %v1438
        %v1440 = vrot.slane %v1408, %v1439
        %v1449 = vsel %vm1292, %v1325, %v1412
        %v1450 = vsel %vm1292, %v1339, %v1416
        %v1451 = vsel %vm1292, %v1347, %v1420
        %v1452 = vsel %vm1292, %v1349, %v1424
        %v1453 = vsel %vm1292, %v1332, %v1428
        %v1454 = vsel %vm1292, %v1346, %v1432
        %v1455 = vsel %vm1292, %v1348, %v1436
        %v1456 = vsel %vm1292, %v1350, %v1440
        %v1457 = vld [vmem:[%s3] sm:$0xff]
        %v1458 = vld [vmem:[%s3 + $0x8] sm:$0xff]
        %v1459 = vld [vmem:[%s3 + $0x10] sm:$0xff]
        %v1460 = vld [vmem:[%s3 + $0x18] sm:$0xff]
        %v1477 = vcombine.low %v1293, %v1294
        %v1478 = vcombine.low %v1449, %v1450
        %v1480 = vunpack.c.l.s4 1983009808
        %v1481 = vunpack.c.0.s8 %v1480
        %v1482 = vlaneseq
        %v1483 = vshrl.u32 %v1482, 7
        %v1484 = vsub.s32 %v1481, %v1483
        %v1485 = vrot.slane %v1477, %v1484
        %v1487 = vunpack.c.l.s4 1983009808
        %v1488 = vunpack.c.0.s8 %v1487
        %v1489 = vlaneseq
        %v1490 = vshrl.u32 %v1489, 7
        %v1491 = vsub.s32 %v1488, %v1490
        %v1492 = vrot.slane %v1478, %v1491
        %v1493 = vcombine.low %v1485, %v1492
        %v1494 = vcombine.low %v1295, %v1296
        %v1495 = vcombine.low %v1451, %v1452
        %v1497 = vunpack.c.l.s4 1983009808
        %v1498 = vunpack.c.0.s8 %v1497
        %v1499 = vlaneseq
        %v1500 = vshrl.u32 %v1499, 7
        %v1501 = vsub.s32 %v1498, %v1500
        %v1502 = vrot.slane %v1494, %v1501
        %v1504 = vunpack.c.l.s4 1983009808
        %v1505 = vunpack.c.0.s8 %v1504
        %v1506 = vlaneseq
        %v1507 = vshrl.u32 %v1506, 7
        %v1508 = vsub.s32 %v1505, %v1507
        %v1509 = vrot.slane %v1495, %v1508
        %v1510 = vcombine.low %v1502, %v1509
        %v1511 = vcombine.low %v1297, %v1298
        %v1512 = vcombine.low %v1453, %v1454
        %v1514 = vunpack.c.l.s4 1983009808
        %v1515 = vunpack.c.0.s8 %v1514
        %v1516 = vlaneseq
        %v1517 = vshrl.u32 %v1516, 7
        %v1518 = vsub.s32 %v1515, %v1517
        %v1519 = vrot.slane %v1511, %v1518
        %v1521 = vunpack.c.l.s4 1983009808
        %v1522 = vunpack.c.0.s8 %v1521
        %v1523 = vlaneseq
        %v1524 = vshrl.u32 %v1523, 7
        %v1525 = vsub.s32 %v1522, %v1524
        %v1526 = vrot.slane %v1512, %v1525
        %v1527 = vcombine.low %v1519, %v1526
        %v1528 = vcombine.low %v1299, %v1300
        %v1529 = vcombine.low %v1455, %v1456
        %v1531 = vunpack.c.l.s4 1983009808
        %v1532 = vunpack.c.0.s8 %v1531
        %v1533 = vlaneseq
        %v1534 = vshrl.u32 %v1533, 7
        %v1535 = vsub.s32 %v1532, %v1534
        %v1536 = vrot.slane %v1528, %v1535
        %v1538 = vunpack.c.l.s4 1983009808
        %v1539 = vunpack.c.0.s8 %v1538
        %v1540 = vlaneseq
        %v1541 = vshrl.u32 %v1540, 7
        %v1542 = vsub.s32 %v1539, %v1541
        %v1543 = vrot.slane %v1529, %v1542
        %v1544 = vcombine.low %v1536, %v1543
        %vm1545 = vcmask 261120
        %v1546 = vsel %vm1545, %v1493, 0
        %v1548 = vsel %vm1545, %v1510, 0
        %v1550 = vsel %vm1545, %v1527, 0
        %v1552 = vsel %vm1545, %v1544, 0
        %1554 = vmatprep.subr.mxu0 0.0
        %1555 = vmatpush1.msra.mxu0 0.0
        %1556 = vmatprep.subr.mxu0 0.0
        %1557 = vmatpush1.msra.mxu0 0.0
        %1558 = vmatprep.subr.mxu0 0.0
        %1559 = vmatpush1.msra.mxu0 0.0
        %1560 = vmatprep.subr.mxu0 0.0
        %1561 = vmatpush1.msra.mxu0 0.0
        %1562 = vmatprep.subr.mxu0 0.0
        %1563 = vmatpush1.msra.mxu0 0.0
        %1564 = vmatprep.subr.mxu0 0.0
        %1565 = vmatpush1.msra.mxu0 0.0
        %1566 = vmatprep.subr.mxu0 0.0
        %1567 = vmatpush1.msra.mxu0 0.0
        %1568 = vmatprep.subr.mxu0 0.0
        %1569 = vmatpush1.msra.mxu0 0.0
        %1570 = vmatprep.subr.mxu0 0.0
        %1571 = vmatpush1.msra.mxu0 0.0
        %1572 = vmatprep.subr.mxu0 0.0
        %1573 = vmatpush1.msra.mxu0 0.0
        %1574 = vmatprep.subr.mxu0 0.0
        %1575 = vmatpush1.msra.mxu0 0.0
        %1576 = vmatprep.subr.mxu0 0.0
        %1577 = vmatpush1.msra.mxu0 0.0
        %1578 = vmatprep.subr.mxu0 0.0
        %1579 = vmatpush1.msra.mxu0 %v1460
        %1580 = vmatprep.subr.mxu0 0.0
        %1581 = vmatpush1.msra.mxu0 %v1459
        %1582 = vmatprep.subr.mxu0 0.0
        %1583 = vmatpush1.msra.mxu0 %v1458
        %1584 = vmatprep.subr.mxu0 0.0
        %1585 = vmatpush1.msra.mxu0 %v1457
        %1586 = vmatprep.subr.mxu0 0.0
        %1587 = vmatpush2.msra.mxu0 0.0
        %1588 = vmatprep.subr.mxu0 0.0
        %1589 = vmatpush2.msra.mxu0 0.0
        %1590 = vmatprep.subr.mxu0 0.0
        %1591 = vmatpush2.msra.mxu0 0.0
        %1592 = vmatprep.subr.mxu0 0.0
        %1593 = vmatpush2.msra.mxu0 0.0
        %1594 = vmatprep.subr.mxu0 0.0
        %1595 = vmatpush2.msra.mxu0 0.0
        %1596 = vmatprep.subr.mxu0 0.0
        %1597 = vmatpush2.msra.mxu0 0.0
        %1598 = vmatprep.subr.mxu0 0.0
        %1599 = vmatpush2.msra.mxu0 0.0
        %1600 = vmatprep.subr.mxu0 0.0
        %1601 = vmatpush2.msra.mxu0 0.0
        %1602 = vmatprep.subr.mxu0 0.0
        %1603 = vmatpush2.msra.mxu0 0.0
        %1604 = vmatprep.subr.mxu0 0.0
        %1605 = vmatpush2.msra.mxu0 0.0
        %1606 = vmatprep.subr.mxu0 0.0
        %1607 = vmatpush2.msra.mxu0 0.0
        %1608 = vmatprep.subr.mxu0 0.0
        %1609 = vmatpush2.msra.mxu0 0.0
        %1610 = vmatprep.subr.mxu0 0.0
        %1611 = vmatpush2.msra.mxu0 0.0
        %1612 = vmatprep.subr.mxu0 0.0
        %1613 = vmatpush2.msra.mxu0 0.0
        %1614 = vmatprep.subr.mxu0 0.0
        %1615 = vmatpush2.msra.mxu0 0.0
        %1616 = vmatprep.subr.mxu0 0.0
        %1617 = vmatpush2.msra.mxu0 0.0
        %1618 = vmatprep.mubr.f32.mxu0 0.0
        %1619 = vmatmul.mubr.f32.gmra.mxu0 %v1546
        %v1620 = vpop.f32.mrf.mxu0
        %v1621 = vpop.f32.mrf.mxu0
        %1622 = vmatprep.mubr.f32.mxu0 0.0
        %1623 = vmatmul.mubr.f32.gmra.mxu0 %v1548
        %v1624 = vpop.f32.mrf.mxu0
        %v1625 = vpop.f32.mrf.mxu0
        %1626 = vmatprep.mubr.f32.mxu0 0.0
        %1627 = vmatmul.mubr.f32.gmra.mxu0 %v1550
        %v1628 = vpop.f32.mrf.mxu0
        %v1629 = vadd.f32 0.0, %v1628
        %v1630 = vpop.f32.mrf.mxu0
        %1631 = vmatprep.mubr.f32.mxu0 0.0
        %1632 = vmatmul.mubr.f32.gmra.mxu0 %v1552
        %v1633 = vpop.f32.mrf.mxu0
        %v1634 = vadd.f32 0.0, %v1633
        %v1635 = vpop.f32.mrf.mxu0
        %1636 = vdwg.mxu0
        %v1639 = vcombine.high %v1629, %v1629
        %v1640 = vcombine.high %v1634, %v1634
        %s1643 = scalar_lea.vmem %s3, 32
        %v1644 = vld [vmem:[%s1643] sm:$0xff]
        %v1645 = vld [vmem:[%s1643 + $0x8] sm:$0xff]
        %v1646 = vld [vmem:[%s1643 + $0x10] sm:$0xff]
        %v1647 = vld [vmem:[%s1643 + $0x18] sm:$0xff]
        %1648 = vmatprep.subr.mxu0 0.0
        %1649 = vmatpush1.msra.mxu0 0.0
        %1650 = vmatprep.subr.mxu0 0.0
        %1651 = vmatpush1.msra.mxu0 0.0
        %1652 = vmatprep.subr.mxu0 0.0
        %1653 = vmatpush1.msra.mxu0 0.0
        %1654 = vmatprep.subr.mxu0 0.0
        %1655 = vmatpush1.msra.mxu0 0.0
        %1656 = vmatprep.subr.mxu0 0.0
        %1657 = vmatpush1.msra.mxu0 0.0
        %1658 = vmatprep.subr.mxu0 0.0
        %1659 = vmatpush1.msra.mxu0 0.0
        %1660 = vmatprep.subr.mxu0 0.0
        %1661 = vmatpush1.msra.mxu0 0.0
        %1662 = vmatprep.subr.mxu0 0.0
        %1663 = vmatpush1.msra.mxu0 0.0
        %1664 = vmatprep.subr.mxu0 0.0
        %1665 = vmatpush1.msra.mxu0 0.0
        %1666 = vmatprep.subr.mxu0 0.0
        %1667 = vmatpush1.msra.mxu0 0.0
        %1668 = vmatprep.subr.mxu0 0.0
        %1669 = vmatpush1.msra.mxu0 0.0
        %1670 = vmatprep.subr.mxu0 0.0
        %1671 = vmatpush1.msra.mxu0 0.0
        %1672 = vmatprep.subr.mxu0 0.0
        %1673 = vmatpush1.msra.mxu0 %v1647
        %1674 = vmatprep.subr.mxu0 0.0
        %1675 = vmatpush1.msra.mxu0 %v1646
        %1676 = vmatprep.subr.mxu0 0.0
        %1677 = vmatpush1.msra.mxu0 %v1645
        %1678 = vmatprep.subr.mxu0 0.0
        %1679 = vmatpush1.msra.mxu0 %v1644
        %1680 = vmatprep.subr.mxu0 0.0
        %1681 = vmatpush2.msra.mxu0 0.0
        %1682 = vmatprep.subr.mxu0 0.0
        %1683 = vmatpush2.msra.mxu0 0.0
        %1684 = vmatprep.subr.mxu0 0.0
        %1685 = vmatpush2.msra.mxu0 0.0
        %1686 = vmatprep.subr.mxu0 0.0
        %1687 = vmatpush2.msra.mxu0 0.0
        %1688 = vmatprep.subr.mxu0 0.0
        %1689 = vmatpush2.msra.mxu0 0.0
        %1690 = vmatprep.subr.mxu0 0.0
        %1691 = vmatpush2.msra.mxu0 0.0
        %1692 = vmatprep.subr.mxu0 0.0
        %1693 = vmatpush2.msra.mxu0 0.0
        %1694 = vmatprep.subr.mxu0 0.0
        %1695 = vmatpush2.msra.mxu0 0.0
        %1696 = vmatprep.subr.mxu0 0.0
        %1697 = vmatpush2.msra.mxu0 0.0
        %1698 = vmatprep.subr.mxu0 0.0
        %1699 = vmatpush2.msra.mxu0 0.0
        %1700 = vmatprep.subr.mxu0 0.0
        %1701 = vmatpush2.msra.mxu0 0.0
        %1702 = vmatprep.subr.mxu0 0.0
        %1703 = vmatpush2.msra.mxu0 0.0
        %1704 = vmatprep.subr.mxu0 0.0
        %1705 = vmatpush2.msra.mxu0 0.0
        %1706 = vmatprep.subr.mxu0 0.0
        %1707 = vmatpush2.msra.mxu0 0.0
        %1708 = vmatprep.subr.mxu0 0.0
        %1709 = vmatpush2.msra.mxu0 0.0
        %1710 = vmatprep.subr.mxu0 0.0
        %1711 = vmatpush2.msra.mxu0 0.0
        %1712 = vmatprep.mubr.f32.mxu0 0.0
        %1713 = vmatmul.mubr.f32.gmra.mxu0 %v1546
        %v1714 = vpop.f32.mrf.mxu0
        %v1715 = vadd.f32 0.0, %v1714
        %v1716 = vpop.f32.mrf.mxu0
        %1717 = vmatprep.mubr.f32.mxu0 0.0
        %1718 = vmatmul.mubr.f32.gmra.mxu0 %v1548
        %v1719 = vpop.f32.mrf.mxu0
        %v1720 = vadd.f32 0.0, %v1719
        %v1721 = vpop.f32.mrf.mxu0
        %1722 = vmatprep.mubr.f32.mxu0 0.0
        %1723 = vmatmul.mubr.f32.gmra.mxu0 %v1550
        %v1724 = vpop.f32.mrf.mxu0
        %v1725 = vadd.f32 0.0, %v1724
        %v1726 = vpop.f32.mrf.mxu0
        %1727 = vmatprep.mubr.f32.mxu0 0.0
        %1728 = vmatmul.mubr.f32.gmra.mxu0 %v1552
        %v1729 = vpop.f32.mrf.mxu0
        %v1730 = vadd.f32 0.0, %v1729
        %v1731 = vpop.f32.mrf.mxu0
        %1732 = vdwg.mxu0
        %v1737 = vcombine.high %v1715, %v1715
        %v1738 = vcombine.high %v1720, %v1720
        %v1739 = vcombine.high %v1725, %v1725
        %v1740 = vcombine.high %v1730, %v1730
        %s1745 = scalar_lea.vmem %s3, 64
        %v1746 = vld [vmem:[%s1745] sm:$0xff]
        %v1747 = vld [vmem:[%s1745 + $0x8] sm:$0xff]
        %v1748 = vld [vmem:[%s1745 + $0x10] sm:$0xff]
        %v1749 = vld [vmem:[%s1745 + $0x18] sm:$0xff]
        %1750 = vmatprep.subr.mxu0 0.0
        %1751 = vmatpush1.msra.mxu0 0.0
        %1752 = vmatprep.subr.mxu0 0.0
        %1753 = vmatpush1.msra.mxu0 0.0
        %1754 = vmatprep.subr.mxu0 0.0
        %1755 = vmatpush1.msra.mxu0 0.0
        %1756 = vmatprep.subr.mxu0 0.0
        %1757 = vmatpush1.msra.mxu0 0.0
        %1758 = vmatprep.subr.mxu0 0.0
        %1759 = vmatpush1.msra.mxu0 0.0
        %1760 = vmatprep.subr.mxu0 0.0
        %1761 = vmatpush1.msra.mxu0 0.0
        %1762 = vmatprep.subr.mxu0 0.0
        %1763 = vmatpush1.msra.mxu0 0.0
        %1764 = vmatprep.subr.mxu0 0.0
        %1765 = vmatpush1.msra.mxu0 0.0
        %1766 = vmatprep.subr.mxu0 0.0
        %1767 = vmatpush1.msra.mxu0 0.0
        %1768 = vmatprep.subr.mxu0 0.0
        %1769 = vmatpush1.msra.mxu0 0.0
        %1770 = vmatprep.subr.mxu0 0.0
        %1771 = vmatpush1.msra.mxu0 0.0
        %1772 = vmatprep.subr.mxu0 0.0
        %1773 = vmatpush1.msra.mxu0 0.0
        %1774 = vmatprep.subr.mxu0 0.0
        %1775 = vmatpush1.msra.mxu0 %v1749
        %1776 = vmatprep.subr.mxu0 0.0
        %1777 = vmatpush1.msra.mxu0 %v1748
        %1778 = vmatprep.subr.mxu0 0.0
        %1779 = vmatpush1.msra.mxu0 %v1747
        %1780 = vmatprep.subr.mxu0 0.0
        %1781 = vmatpush1.msra.mxu0 %v1746
        %1782 = vmatprep.subr.mxu0 0.0
        %1783 = vmatpush2.msra.mxu0 0.0
        %1784 = vmatprep.subr.mxu0 0.0
        %1785 = vmatpush2.msra.mxu0 0.0
        %1786 = vmatprep.subr.mxu0 0.0
        %1787 = vmatpush2.msra.mxu0 0.0
        %1788 = vmatprep.subr.mxu0 0.0
        %1789 = vmatpush2.msra.mxu0 0.0
        %1790 = vmatprep.subr.mxu0 0.0
        %1791 = vmatpush2.msra.mxu0 0.0
        %1792 = vmatprep.subr.mxu0 0.0
        %1793 = vmatpush2.msra.mxu0 0.0
        %1794 = vmatprep.subr.mxu0 0.0
        %1795 = vmatpush2.msra.mxu0 0.0
        %1796 = vmatprep.subr.mxu0 0.0
        %1797 = vmatpush2.msra.mxu0 0.0
        %1798 = vmatprep.subr.mxu0 0.0
        %1799 = vmatpush2.msra.mxu0 0.0
        %1800 = vmatprep.subr.mxu0 0.0
        %1801 = vmatpush2.msra.mxu0 0.0
        %1802 = vmatprep.subr.mxu0 0.0
        %1803 = vmatpush2.msra.mxu0 0.0
        %1804 = vmatprep.subr.mxu0 0.0
        %1805 = vmatpush2.msra.mxu0 0.0
        %1806 = vmatprep.subr.mxu0 0.0
        %1807 = vmatpush2.msra.mxu0 0.0
        %1808 = vmatprep.subr.mxu0 0.0
        %1809 = vmatpush2.msra.mxu0 0.0
        %1810 = vmatprep.subr.mxu0 0.0
        %1811 = vmatpush2.msra.mxu0 0.0
        %1812 = vmatprep.subr.mxu0 0.0
        %1813 = vmatpush2.msra.mxu0 0.0
        %1814 = vmatprep.mubr.f32.mxu0 0.0
        %1815 = vmatmul.mubr.f32.gmra.mxu0 %v1546
        %v1816 = vpop.f32.mrf.mxu0
        %v1817 = vadd.f32 0.0, %v1816
        %v1818 = vpop.f32.mrf.mxu0
        %1819 = vmatprep.mubr.f32.mxu0 0.0
        %1820 = vmatmul.mubr.f32.gmra.mxu0 %v1548
        %v1821 = vpop.f32.mrf.mxu0
        %v1822 = vadd.f32 0.0, %v1821
        %v1823 = vpop.f32.mrf.mxu0
        %1824 = vmatprep.mubr.f32.mxu0 0.0
        %1825 = vmatmul.mubr.f32.gmra.mxu0 %v1550
        %v1826 = vpop.f32.mrf.mxu0
        %v1827 = vadd.f32 0.0, %v1826
        %v1828 = vpop.f32.mrf.mxu0
        %1829 = vmatprep.mubr.f32.mxu0 0.0
        %1830 = vmatmul.mubr.f32.gmra.mxu0 %v1552
        %v1831 = vpop.f32.mrf.mxu0
        %v1832 = vadd.f32 0.0, %v1831
        %v1833 = vpop.f32.mrf.mxu0
        %1834 = vdwg.mxu0
        %v1839 = vcombine.high %v1817, %v1817
        %v1840 = vcombine.high %v1822, %v1822
        %v1841 = vcombine.high %v1827, %v1827
        %v1842 = vcombine.high %v1832, %v1832
        %v1847 = vld [vmem:[%s4] sm:$0x1]
        %v1849 = vlaneseq
        %v1850 = vshrl.u32 %v1849, 7
        %v1851 = vsub.s32 0, %v1850
        %v1852 = vrot.slane %v1847, %v1851
        %v1854 = vadd.f32 %v1715, %v1852
        %v1855 = vadd.f32 %v1737, %v1852
        %v1856 = vadd.f32 %v1720, %v1852
        %v1857 = vadd.f32 %v1738, %v1852
        %v1858 = vadd.f32 %v1725, %v1852
        %v1859 = vadd.f32 %v1739, %v1852
        %v1860 = vadd.f32 %v1730, %v1852
        %v1861 = vadd.f32 %v1740, %v1852
        %v1862 = vmax.f32 %v1854, 0.0
        %v1863 = vmax.f32 %v1855, 0.0
        %v1864 = vmax.f32 %v1856, 0.0
        %v1865 = vmax.f32 %v1857, 0.0
        %v1866 = vmax.f32 %v1858, 0.0
        %v1867 = vmax.f32 %v1859, 0.0
        %v1868 = vmax.f32 %v1860, 0.0
        %v1869 = vmax.f32 %v1861, 0.0
        %v1870 = vadd.f32 %v1817, %v1629
        %v1871 = vadd.f32 %v1839, %v1639
        %v1872 = vadd.f32 %v1822, %v1634
        %v1873 = vadd.f32 %v1840, %v1640
        %v1874 = vadd.f32 %v1827, 0.0
        %v1875 = vadd.f32 %v1841, 0.0
        %v1876 = vadd.f32 %v1832, 0.0
        %v1877 = vadd.f32 %v1842, 0.0
        %v1878 = vadd.f32 %v1870, %v1852
        %v1879 = vadd.f32 %v1871, %v1852
        %v1880 = vadd.f32 %v1872, %v1852
        %v1881 = vadd.f32 %v1873, %v1852
        %v1882 = vadd.f32 %v1874, %v1852
        %v1883 = vadd.f32 %v1875, %v1852
        %v1884 = vadd.f32 %v1876, %v1852
        %v1885 = vadd.f32 %v1877, %v1852
        %v1886 = vmax.f32 %v1878, 0.0
        %v1887 = vmax.f32 %v1879, 0.0
        %v1888 = vmax.f32 %v1880, 0.0
        %v1889 = vmax.f32 %v1881, 0.0
        %v1890 = vmax.f32 %v1882, 0.0
        %v1891 = vmax.f32 %v1883, 0.0
        %v1892 = vmax.f32 %v1884, 0.0
        %v1893 = vmax.f32 %v1885, 0.0
        %v1894 = vld [vmem:[%s307] sm:$0xf]
        %v1895 = vld [vmem:[%s307 + $0x4] sm:$0xf]
        %v1896 = vld [vmem:[%s307 + $0x8] sm:$0xf]
        %v1897 = vld [vmem:[%s307 + $0xc] sm:$0xf]
        %v1898 = vld [vmem:[%s307 + $0x10] sm:$0xf]
        %v1899 = vld [vmem:[%s307 + $0x14] sm:$0xf]
        %v1900 = vld [vmem:[%s307 + $0x18] sm:$0xf]
        %v1901 = vld [vmem:[%s307 + $0x1c] sm:$0xf]
        %v1902 = vld [vmem:[%s307 + $0x20] sm:$0xf]
        %v1903 = vld [vmem:[%s307 + $0x24] sm:$0xf]
        %v1904 = vld [vmem:[%s307 + $0x28] sm:$0xf]
        %v1905 = vld [vmem:[%s307 + $0x2c] sm:$0xf]
        %v1906 = vld [vmem:[%s307 + $0x30] sm:$0xf]
        %v1907 = vld [vmem:[%s307 + $0x34] sm:$0xf]
        %v1908 = vld [vmem:[%s307 + $0x38] sm:$0xf]
        %v1909 = vld [vmem:[%s307 + $0x3c] sm:$0xf]
        %v1910 = vadd.f32 %v1894, %v1862
        %v1911 = vadd.f32 %v1895, %v1863
        %v1912 = vadd.f32 %v1896, %v1864
        %v1913 = vadd.f32 %v1897, %v1865
        %v1914 = vadd.f32 %v1898, %v1886
        %v1915 = vadd.f32 %v1899, %v1887
        %v1916 = vadd.f32 %v1900, %v1888
        %v1917 = vadd.f32 %v1901, %v1889
        %v1918 = vadd.f32 %v1902, %v1866
        %v1919 = vadd.f32 %v1903, %v1867
        %v1920 = vadd.f32 %v1904, %v1868
        %v1921 = vadd.f32 %v1905, %v1869
        %v1922 = vadd.f32 %v1906, %v1890
        %v1923 = vadd.f32 %v1907, %v1891
        %v1924 = vadd.f32 %v1908, %v1892
        %v1925 = vadd.f32 %v1909, %v1893
        %vm1926 = vcmask 257024
        %1927 = vst.msk [vmem:[%s290] sm:$0xf] %vm1926, %v1910
        %1928 = vst.msk [vmem:[%s290 + $0x4] sm:$0xf] %vm1926, %v1911
        %1929 = vst.msk [vmem:[%s290 + $0x8] sm:$0xf] %vm1926, %v1912
        %1930 = vst.msk [vmem:[%s290 + $0xc] sm:$0xf] %vm1926, %v1913
        %1931 = vst.msk [vmem:[%s290 + $0x10] sm:$0xf] %vm1926, %v1914
        %1932 = vst.msk [vmem:[%s290 + $0x14] sm:$0xf] %vm1926, %v1915
        %1933 = vst.msk [vmem:[%s290 + $0x18] sm:$0xf] %vm1926, %v1916
        %1934 = vst.msk [vmem:[%s290 + $0x1c] sm:$0xf] %vm1926, %v1917
        %1935 = vst.msk [vmem:[%s290 + $0x20] sm:$0xf] %vm1926, %v1918
        %1936 = vst.msk [vmem:[%s290 + $0x24] sm:$0xf] %vm1926, %v1919
        %1937 = vst.msk [vmem:[%s290 + $0x28] sm:$0xf] %vm1926, %v1920
        %1938 = vst.msk [vmem:[%s290 + $0x2c] sm:$0xf] %vm1926, %v1921
        %1939 = vst.msk [vmem:[%s290 + $0x30] sm:$0xf] %vm1926, %v1922
        %1940 = vst.msk [vmem:[%s290 + $0x34] sm:$0xf] %vm1926, %v1923
        %1941 = vst.msk [vmem:[%s290 + $0x38] sm:$0xf] %vm1926, %v1924
        %1942 = vst.msk [vmem:[%s290 + $0x3c] sm:$0xf] %vm1926, %v1925
        %v1959 = vcombine.low %v1910, %v1911
        %v1960 = vcombine.low %v1912, %v1913
        %v1961 = vcombine.low %v1914, %v1915
        %v1962 = vcombine.low %v1916, %v1917
        %v1963 = vcombine.low %v1918, %v1919
        %v1964 = vcombine.low %v1920, %v1921
        %v1965 = vcombine.low %v1922, %v1923
        %v1966 = vcombine.low %v1924, %v1925
        %v1975 = vsel %vm1545, %v1959, 0.0
        %v1976 = vsel %vm1545, %v1960, 0.0
        %v1977 = vadd.f32 %v1975, %v1976
        %v1978 = vrot.slane %v1977, 4
        %v1979 = vadd.f32 %v1977, %v1978
        %v1980 = vrot.slane %v1979, 2
        %v1981 = vadd.f32 %v1979, %v1980
        %v1982 = vrot.slane %v1981, 1
        %v1983 = vadd.f32 %v1981, %v1982
        %v1984 = vsel %vm1545, %v1961, 0.0
        %v1985 = vsel %vm1545, %v1962, 0.0
        %v1986 = vadd.f32 %v1984, %v1985
        %v1987 = vrot.slane %v1986, 4
        %v1988 = vadd.f32 %v1986, %v1987
        %v1989 = vrot.slane %v1988, 2
        %v1990 = vadd.f32 %v1988, %v1989
        %v1991 = vrot.slane %v1990, 1
        %v1992 = vadd.f32 %v1990, %v1991
        %v1993 = vsel %vm1545, %v1963, 0.0
        %v1994 = vsel %vm1545, %v1964, 0.0
        %v1995 = vadd.f32 %v1993, %v1994
        %v1996 = vrot.slane %v1995, 4
        %v1997 = vadd.f32 %v1995, %v1996
        %v1998 = vrot.slane %v1997, 2
        %v1999 = vadd.f32 %v1997, %v1998
        %v2000 = vrot.slane %v1999, 1
        %v2001 = vadd.f32 %v1999, %v2000
        %v2002 = vsel %vm1545, %v1965, 0.0
        %v2003 = vsel %vm1545, %v1966, 0.0
        %v2004 = vadd.f32 %v2002, %v2003
        %v2005 = vrot.slane %v2004, 4
        %v2006 = vadd.f32 %v2004, %v2005
        %v2007 = vrot.slane %v2006, 2
        %v2008 = vadd.f32 %v2006, %v2007
        %v2009 = vrot.slane %v2008, 1
        %v2010 = vadd.f32 %v2008, %v2009
        %v2011 = vmul.f32 %v1983, 0.0625
        %v2012 = vmul.f32 %v1992, 0.0625
        %v2013 = vmul.f32 %v2001, 0.0625
        %v2014 = vmul.f32 %v2010, 0.0625
        %vm2019 = vcmask 1041409
        %v2020 = vsel %vm2019, %v2012, %v2011
        %vm2021 = vcmask 1042434
        %v2022 = vsel %vm2021, %v2013, %v2020
        %vm2023 = vcmask 1043459
        %v2024 = vsel %vm2023, %v2014, %v2022
        %2026 = vst.msk [vmem:[%s297] sm:$0xf] %vm1926, %v2024
        %s2027 = sand.u32 %s169, 1
        %s2028 = scalar_lea.sflag [#allocation3], %s2027
        %s2029 = sand.u32 %s169, 1
        %s2030 = smul.addr %s2029, 64
        %s2031 = scalar_lea.vmem [#allocation2], %s2030
        %s2032 = sand.u32 %s195, 1
        %s2033 = scalar_lea.sflag [#allocation5], %s2032
        %s2034 = sand.u32 %s195, 1
        %s2035 = smul.addr %s2034, 4
        %s2036 = scalar_lea.vmem [#allocation4], %s2035
        // Predicated region
        $region45: #{tpu_custom_call.1} parent=43 // pred_check
          %p2037 = pneg %p179
        $region46: #{tpu_custom_call.1} parent=43 // pred_check_branch
          %2039 = sbr.rel (%p2037) target = $region48
        $region47: #{tpu_custom_call.1} parent=43 // pred_region
          %s2041 = ssub.s32 1024, 1024
          %2042 = vsyncadd %s2028, %s2041
          %s2043 = smul.addr %s25, 16
          %s2044 = smul.addr %s2043, 64
          %s2045 = scalar_lea.hbm %s6, %s2044
          %s2046 = sshll.u32 %s2031, 4
          %s2047 = int_to_ptr.vmem [resolvable:$true] %s2046
          %2052 = dma.vmem_to_hbm [thread:$0]  %s2047, 1024, %s2045, %s2028, 64, 64, 4
        $region48: #{tpu_custom_call.1} parent=43 // pred_fallthru
          _
        // Predicated region
        $region49: #{tpu_custom_call.1} parent=43 // pred_check
          %p2053 = pneg %p205
        $region50: #{tpu_custom_call.1} parent=43 // pred_check_branch
          %2055 = sbr.rel (%p2053) target = $region52
        $region51: #{tpu_custom_call.1} parent=43 // pred_region
          %s2057 = ssub.s32 64, 64
          %2058 = vsyncadd %s2033, %s2057
          %s2059 = smul.addr %s25, 64
          %s2060 = scalar_lea.hbm %s7, %s2059
          %s2062 = sshll.u32 %s2036, 4
          %s2063 = int_to_ptr.vmem [resolvable:$true] %s2062
          %2065 = dma.vmem_to_hbm [thread:$0]  %s2063, 64, %s2060, %s2033
        $region52: #{tpu_custom_call.1} parent=43 // pred_fallthru
          _
      $region44: #{tpu_custom_call.1} parent=5 // pred_fallthru
        _
      %p2066 = scmp.le.s32.totalorder 2, %s20
      // Predicated region
      $region53: #{tpu_custom_call.1} parent=5 // pred_check
        %p2067 = pneg %p2066
      $region54: #{tpu_custom_call.1} parent=5 // pred_check_branch
        %2069 = sbr.rel (%p2067) target = $region56
      $region55: #{tpu_custom_call.1} parent=5 // pred_region
        %s2070 = ssub.s32 %s20, 2
        // Predicated region
        $region57: #{tpu_custom_call.1} parent=55 // pred_check
          %p2071 = pneg %p185
        $region58: #{tpu_custom_call.1} parent=55 // pred_check_branch
          %2073 = sbr.rel (%p2071) target = $region60
        $region59: #{tpu_custom_call.1} parent=55 // pred_region
          %s2074 = sand.u32 %s170, 1
          %s2075 = scalar_lea.sflag [#allocation3], %s2074
          %s2076 = sand.u32 %s170, 1
          %s2077 = smul.addr %s2076, 64
          %s2078 = scalar_lea.vmem [#allocation2], %s2077
          %2079 = dma.done %s2075, 1024
        $region60: #{tpu_custom_call.1} parent=55 // pred_fallthru
          _
        // Predicated region
        $region61: #{tpu_custom_call.1} parent=55 // pred_check
          %p2080 = pneg %p211
        $region62: #{tpu_custom_call.1} parent=55 // pred_check_branch
          %2082 = sbr.rel (%p2080) target = $region64
        $region63: #{tpu_custom_call.1} parent=55 // pred_region
          %s2083 = sand.u32 %s196, 1
          %s2084 = scalar_lea.sflag [#allocation5], %s2083
          %s2085 = sand.u32 %s196, 1
          %s2086 = smul.addr %s2085, 4
          %s2087 = scalar_lea.vmem [#allocation4], %s2086
          %2088 = dma.done %s2084, 64
        $region64: #{tpu_custom_call.1} parent=55 // pred_fallthru
          _
      $region56: #{tpu_custom_call.1} parent=5 // pred_fallthru
        _
    $region6: #{tpu_custom_call.1} parent=1 // loop_footer
      %s24 = sadd.s32 1, %s20
    $region7: #{tpu_custom_call.1} parent=1 // loop_footer_branch
      %19 = sbr.rel target = $region3
    $region8: #{tpu_custom_call.1} parent=1 // loop_exit
      _
    %2089 = vsyncpa [#allocation3], 1
    %s2090 = scalar_lea.sflag [#allocation3], 1
    %2091 = vsyncpa %s2090, 1
    %2092 = vsyncpa [#allocation5], 1
    %s2093 = scalar_lea.sflag [#allocation5], 1
    %2094 = vsyncpa %s2093, 1

</llo_original>
